<compile_context>
chip_gen: v5e
topology: v5e:2x2
jax: 0.10.0
libtpu: 0.0.40
codegen_flags: <defaults>
</compile_context>

<pallas_src>
import functools

import jax
import jax.numpy as jnp
import numpy as np
from jax import lax
from jax.experimental import pallas as pl
from jax.experimental.pallas import tpu as pltpu


def _bottleneck_kernel(x_ref, m2_ref, w1_ref, s1_ref, b1_ref,
                       w2_ref, s2_ref, b2_ref,
                       w3_ref, s3_ref, b3_ref,
                       *rest, Bt, H, W, Cin, P, stride, has_proj):
    """One batch tile per grid step. x_ref block: (Bt, H, W, Cin) bf16 NHWC."""
    if has_proj:
        ws_ref, ss_ref, bs_ref, o_ref = rest
    else:
        (o_ref,) = rest

    Ho = (H - 1) // stride + 1
    Wo = (W - 1) // stride + 1
    Cout = 4 * P
    M = Bt * H * W           # flattened rows at input resolution
    Mo = Bt * Ho * Wo        # flattened rows at output resolution

    x_mat = x_ref[...].reshape(M, Cin)                         # bf16

    # ---- conv1 (1x1) + bn1 + relu : one MXU matmul -------------------------
    h1 = jnp.dot(x_mat, w1_ref[...], preferred_element_type=jnp.float32)
    h1 = jnp.maximum(h1 * s1_ref[...] + b1_ref[...], 0.0)      # (M, P) f32

    # ---- conv2 (3x3, pad=1) + bn2 + relu -----------------------------------
    # Taps via XLU rolls of the flattened rows + precomputed boundary masks
    # (zero padding).  Rolls that wrap across image boundaries land on rows
    # that the mask zeroes out, so batching Bt images in one flat axis is safe.
    acc = jnp.zeros((M, P), jnp.float32)
    for dy in range(3):
        for dx in range(3):
            k = dy * 3 + dx
            s = (dy - 1) * W + (dx - 1)                        # row shift needed
            if s == 0:
                tap = h1                                        # centre tap: no roll/mask
            else:
                tap = pltpu.roll(h1, (-s) % M, 0) * m2_ref[k]   # (M, P) f32
            acc = acc + jnp.dot(tap.astype(jnp.bfloat16), w2_ref[k],
                                preferred_element_type=jnp.float32)
    h2 = jnp.maximum(acc * s2_ref[...] + b2_ref[...], 0.0)      # (M, P) f32

    if stride > 1:
        # TODO(synk): compute conv2 only at strided output positions instead of
        # full resolution + subsample (saves stride^2 MXU/VPU work).
        h2 = h2.reshape(Bt, H, W, P)[:, ::stride, ::stride, :].reshape(Mo, P)

    # ---- conv3 (1x1) + bn3 --------------------------------------------------
    h3 = jnp.dot(h2.astype(jnp.bfloat16), w3_ref[...],
                 preferred_element_type=jnp.float32)
    h3 = h3 * s3_ref[...] + b3_ref[...]                          # (Mo, 4P) f32

    # ---- shortcut -----------------------------------------------------------
    if has_proj:
        if stride > 1:
            xs = x_ref[:, pl.ds(0, Ho, stride), pl.ds(0, Wo, stride), :]
        else:
            xs = x_ref[...]
        sc = jnp.dot(xs.reshape(Mo, Cin), ws_ref[...],
                     preferred_element_type=jnp.float32)
        sc = sc * ss_ref[...] + bs_ref[...]
    else:
        # identity (only valid when Cin == 4P and stride == 1); re-read x here
        # so its live range does not span the whole 3x3 tap loop.
        sc = x_ref[...].reshape(M, Cin).astype(jnp.float32)

    o_ref[...] = jnp.maximum(h3 + sc, 0.0).reshape(Bt, Ho, Wo, Cout)


def _conv2_tap_masks(Bt, H, W):
    """(9, Bt*H*W, 1) f32 masks implementing zero padding for the 3x3 taps."""
    M = Bt * H * W
    r = np.arange(M) % (H * W)
    y = r // W
    x = r % W
    masks = np.zeros((9, M, 1), np.float32)
    k = 0
    for dy in (-1, 0, 1):
        for dx in (-1, 0, 1):
            valid = (y + dy >= 0) & (y + dy < H) & (x + dx >= 0) & (x + dx < W)
            masks[k, :, 0] = valid.astype(np.float32)
            k += 1
    return jnp.asarray(masks)


def _pick_batch_tile(N, H, W, Cin, P, Cout, stride, budget=24 << 20):
    """Largest divisor of N fitting the VMEM budget while keeping >=2 grid steps."""
    Ho = (H - 1) // stride + 1
    Wo = (W - 1) // stride + 1
    best = 1
    for bt in range(1, N + 1):
        if N % bt:
            continue
        M, Mo = bt * H * W, bt * Ho * Wo
        est = (2 * M * Cin * 2            # double-buffered bf16 input block
               + 2 * Mo * Cout * 4        # double-buffered f32 output block
               + M * (Cin + 4 * P) * 4    # f32 intermediates (h1/acc/taps)
               + Mo * Cout * 8)           # h3 + shortcut
        if est > budget:
            continue
        if N >= 2 and N // bt < 2:        # keep >=2 parallel steps (v7x megacore)
            continue
        best = max(best, bt)
    return best


def bottleneck_forward(x_nchw, params, *, planes, stride=1, batch_tile=None):
    """Runs the fused Bottleneck block. Input/output are NCHW (PyTorch conv.)."""
    x = jnp.transpose(x_nchw, (0, 2, 3, 1))                     # -> NHWC
    N, H, W, Cin = x.shape
    P = planes
    Cout = 4 * P
    Ho = (H - 1) // stride + 1
    Wo = (W - 1) // stride + 1
    has_proj = (stride != 1) or (Cin != Cout)

    if batch_tile is None:
        batch_tile = _pick_batch_tile(N, H, W, Cin, P, Cout, stride)
    Bt = batch_tile
    assert N % Bt == 0, (N, Bt)
    M = Bt * H * W

    bf = jnp.bfloat16
    x_bf = x.astype(bf)                                         # halves input DMA
    tap_masks = _conv2_tap_masks(Bt, H, W)

    def full_spec(shape):
        nd = len(shape)
        return pl.BlockSpec(shape, lambda n, _nd=nd: (0,) * _nd)

    in_specs = [
        pl.BlockSpec((Bt, H, W, Cin), lambda n: (n, 0, 0, 0)),  # x (bf16)
        full_spec((9, M, 1)),                                   # 3x3 boundary masks
        full_spec((Cin, P)),      # w1
        full_spec((1, P)),        # bn1 scale
        full_spec((1, P)),        # bn1 bias
        full_spec((9, P, P)),     # w2 taps (ky*3+kx, cin, cout)
        full_spec((1, P)),        # bn2 scale
        full_spec((1, P)),        # bn2 bias
        full_spec((P, Cout)),     # w3
        full_spec((1, Cout)),     # bn3 scale
        full_spec((1, Cout)),     # bn3 bias
    ]
    args = [x_bf, tap_masks,
            params["w1"].astype(bf), params["s1"], params["b1"],
            params["w2_taps"].astype(bf), params["s2"], params["b2"],
            params["w3"].astype(bf), params["s3"], params["b3"]]
    if has_proj:                                  # only DMA proj weights if needed
        in_specs += [full_spec((Cin, Cout)), full_spec((1, Cout)),
                     full_spec((1, Cout))]
        args += [params["ws"].astype(bf), params["ss"], params["bs"]]

    kernel = functools.partial(_bottleneck_kernel, Bt=Bt, H=H, W=W, Cin=Cin,
                               P=P, stride=stride, has_proj=has_proj)

    out = pl.pallas_call(
        kernel,
        out_shape=jax.ShapeDtypeStruct((N, Ho, Wo, Cout), jnp.float32),
        grid_spec=pltpu.PrefetchScalarGridSpec(
            num_scalar_prefetch=0,
            grid=(N // Bt,),
            in_specs=in_specs,
            out_specs=pl.BlockSpec((Bt, Ho, Wo, Cout), lambda n: (n, 0, 0, 0)),
        ),
        compiler_params=pltpu.CompilerParams(
            dimension_semantics=("parallel",),
            vmem_limit_bytes=48 * 1024 * 1024),   # safe on v7x's 64 MiB VMEM
    )(*args)

    return jnp.transpose(out, (0, 3, 1, 2))                     # -> NCHW


# ------------------------- pure-JAX reference --------------------------------
def ref_bottleneck(x_nchw, params, *, stride, has_proj):
    """Mirrors the kernel's quantization: bf16 conv operands, f32 accumulate."""
    x = jnp.transpose(x_nchw, (0, 2, 3, 1)).astype(jnp.bfloat16)

    def conv(h, w_hwio, s, pad):
        return lax.conv_general_dilated(
            h.astype(jnp.bfloat16), w_hwio.astype(jnp.bfloat16),
            window_strides=(s, s), padding=pad,
            dimension_numbers=("NHWC", "HWIO", "NHWC"),
            preferred_element_type=jnp.float32)

    Cin, P = params["w1"].shape
    Cout = params["w3"].shape[1]
    h = conv(x, params["w1"].reshape(1, 1, Cin, P), 1, [(0, 0), (0, 0)])
    h = jnp.maximum(h * params["s1"] + params["b1"], 0.0)
    h = conv(h, params["w2_hwio"], stride, [(1, 1), (1, 1)])
    h = jnp.maximum(h * params["s2"] + params["b2"], 0.0)
    h = conv(h, params["w3"].reshape(1, 1, P, Cout), 1, [(0, 0), (0, 0)])
    h = h * params["s3"] + params["b3"]
    if has_proj:
        sc = conv(x, params["ws"].reshape(1, 1, Cin, Cout), stride,
                  [(0, 0), (0, 0)])
        sc = sc * params["ss"] + params["bs"]
    else:
        sc = x.astype(jnp.float32)
    return jnp.transpose(jnp.maximum(h + sc, 0.0), (0, 3, 1, 2))


# ------------------------- deterministic params ------------------------------
def make_params(key, in_planes, planes):
    P, Cin, Cout = planes, in_planes, 4 * planes
    ks = jax.random.split(key, 20)

    def bn_fold(kg, kb, km, kv, C):
        gamma = 1.0 + 0.1 * jax.random.normal(kg, (C,), jnp.float32)
        beta = 0.1 * jax.random.normal(kb, (C,), jnp.float32)
        mean = 0.1 * jax.random.normal(km, (C,), jnp.float32)
        var = jnp.abs(jax.random.normal(kv, (C,), jnp.float32)) + 0.5
        scale = gamma / jnp.sqrt(var + 1e-5)
        bias = beta - mean * scale
        return scale.reshape(1, C), bias.reshape(1, C)

    w1 = 0.1 * jax.random.normal(ks[0], (Cin, P), jnp.float32)          # (in, out)
    w2_hwio = 0.1 * jax.random.normal(ks[1], (3, 3, P, P), jnp.float32)
    w3 = 0.1 * jax.random.normal(ks[2], (P, Cout), jnp.float32)
    ws = 0.1 * jax.random.normal(ks[3], (Cin, Cout), jnp.float32)

    s1, b1 = bn_fold(ks[4], ks[5], ks[6], ks[7], P)
    s2, b2 = bn_fold(ks[8], ks[9], ks[10], ks[11], P)
    s3, b3 = bn_fold(ks[12], ks[13], ks[14], ks[15], Cout)
    ss, bs = bn_fold(ks[16], ks[17], ks[18], ks[19], Cout)

    return dict(w1=w1, w2_hwio=w2_hwio, w2_taps=w2_hwio.reshape(9, P, P),
                w3=w3, ws=ws,
                s1=s1, b1=b1, s2=s2, b2=b2, s3=s3, b3=b3, ss=ss, bs=bs)


if __name__ == "__main__":
    key = jax.random.PRNGKey(0)

    # (N, in_planes, planes, H, W, stride)
    configs = [
        (4, 64, 32, 8, 8, 1),    # projection shortcut (Cin != 4*planes), Cout = 128
        (2, 128, 32, 8, 8, 1),   # identity shortcut
    ]
    for (N, in_planes, planes, H, W, stride) in configs:
        key, kx, kp = jax.random.split(key, 3)
        x = jax.random.normal(kx, (N, in_planes, H, W), jnp.float32)    # NCHW
        params = make_params(kp, in_planes, planes)

        out = jax.block_until_ready(
            bottleneck_forward(x, params, planes=planes, stride=stride))

        has_proj = (stride != 1) or (in_planes != 4 * planes)
        ref = jax.block_until_ready(
            ref_bottleneck(x, params, stride=stride, has_proj=has_proj))

        Ho = (H - 1) // stride + 1
        Wo = (W - 1) // stride + 1
        assert out.shape == (N, 4 * planes, Ho, Wo), out.shape
        np.testing.assert_allclose(np.asarray(out), np.asarray(ref),
                                   rtol=2e-3, atol=2e-3)

    print("KERNEL_OK")
</pallas_src>

<mosaic_0001>
module attributes {stable_mosaic.version = 11 : i64} {
  func.func @_bottleneck_kernel(%arg0: i32, %arg1: memref<2x8x8x64xbf16, #tpu.memory_space<vmem>>, %arg2: memref<9x128x1xf32, #tpu.memory_space<vmem>>, %arg3: memref<64x32xbf16, #tpu.memory_space<vmem>>, %arg4: memref<1x32xf32, #tpu.memory_space<vmem>>, %arg5: memref<1x32xf32, #tpu.memory_space<vmem>>, %arg6: memref<9x32x32xbf16, #tpu.memory_space<vmem>>, %arg7: memref<1x32xf32, #tpu.memory_space<vmem>>, %arg8: memref<1x32xf32, #tpu.memory_space<vmem>>, %arg9: memref<32x128xbf16, #tpu.memory_space<vmem>>, %arg10: memref<1x128xf32, #tpu.memory_space<vmem>>, %arg11: memref<1x128xf32, #tpu.memory_space<vmem>>, %arg12: memref<64x128xbf16, #tpu.memory_space<vmem>>, %arg13: memref<1x128xf32, #tpu.memory_space<vmem>>, %arg14: memref<1x128xf32, #tpu.memory_space<vmem>>, %arg15: memref<2x8x8x128xf32, #tpu.memory_space<vmem>>) attributes {dimension_semantics = [#tpu.dimension_semantics<parallel>], iteration_bounds = array<i64: 2>, scalar_prefetch = 0 : i64, scratch_operands = 0 : i64, tpu.core_type = #tpu.core_type<tc>, window_params = [{transform_indices = @transform_0, window_bounds = array<i64: 2, 8, 8, 64>}, {pipeline_mode = #tpu.pipeline_mode<synchronous>, transform_indices = @transform_1, window_bounds = array<i64: 9, 128, 1>}, {pipeline_mode = #tpu.pipeline_mode<synchronous>, transform_indices = @transform_2, window_bounds = array<i64: 64, 32>}, {pipeline_mode = #tpu.pipeline_mode<synchronous>, transform_indices = @transform_3, window_bounds = array<i64: 1, 32>}, {pipeline_mode = #tpu.pipeline_mode<synchronous>, transform_indices = @transform_4, window_bounds = array<i64: 1, 32>}, {pipeline_mode = #tpu.pipeline_mode<synchronous>, transform_indices = @transform_5, window_bounds = array<i64: 9, 32, 32>}, {pipeline_mode = #tpu.pipeline_mode<synchronous>, transform_indices = @transform_6, window_bounds = array<i64: 1, 32>}, {pipeline_mode = #tpu.pipeline_mode<synchronous>, transform_indices = @transform_7, window_bounds = array<i64: 1, 32>}, {pipeline_mode = #tpu.pipeline_mode<synchronous>, transform_indices = @transform_8, window_bounds = array<i64: 32, 128>}, {pipeline_mode = #tpu.pipeline_mode<synchronous>, transform_indices = @transform_9, window_bounds = array<i64: 1, 128>}, {pipeline_mode = #tpu.pipeline_mode<synchronous>, transform_indices = @transform_10, window_bounds = array<i64: 1, 128>}, {pipeline_mode = #tpu.pipeline_mode<synchronous>, transform_indices = @transform_11, window_bounds = array<i64: 64, 128>}, {pipeline_mode = #tpu.pipeline_mode<synchronous>, transform_indices = @transform_12, window_bounds = array<i64: 1, 128>}, {pipeline_mode = #tpu.pipeline_mode<synchronous>, transform_indices = @transform_13, window_bounds = array<i64: 1, 128>}, {transform_indices = @transform_14, window_bounds = array<i64: 2, 8, 8, 128>}]} {
    %c0 = arith.constant 0 : index
    %c0_0 = arith.constant 0 : index
    %c0_1 = arith.constant 0 : index
    %c0_2 = arith.constant 0 : index
    %0 = vector.load %arg1[%c0, %c0_0, %c0_1, %c0_2] : memref<2x8x8x64xbf16, #tpu.memory_space<vmem>>, vector<2x8x8x64xbf16>
    %1 = vector.shape_cast %0 : vector<2x8x8x64xbf16> to vector<128x64xbf16>
    %c0_3 = arith.constant 0 : index
    %c0_4 = arith.constant 0 : index
    %2 = vector.load %arg3[%c0_3, %c0_4] : memref<64x32xbf16, #tpu.memory_space<vmem>>, vector<64x32xbf16>
    %cst = arith.constant dense<0.000000e+00> : vector<128x32xf32>
    %3 = tpu.matmul %1, %2, %cst {dimension_numbers = #tpu.dot_dimension_numbers<[1], [0], [0], [1], [0, 0, 1, 1], [], []>} : vector<128x64xbf16>, vector<64x32xbf16>, vector<128x32xf32> -> vector<128x32xf32>
    %c0_5 = arith.constant 0 : index
    %c0_6 = arith.constant 0 : index
    %4 = vector.load %arg4[%c0_5, %c0_6] : memref<1x32xf32, #tpu.memory_space<vmem>>, vector<1x32xf32>
    %5 = vector.broadcast %4 : vector<1x32xf32> to vector<128x32xf32>
    %6 = arith.mulf %3, %5 : vector<128x32xf32>
    %c0_7 = arith.constant 0 : index
    %c0_8 = arith.constant 0 : index
    %7 = vector.load %arg5[%c0_7, %c0_8] : memref<1x32xf32, #tpu.memory_space<vmem>>, vector<1x32xf32>
    %8 = vector.broadcast %7 : vector<1x32xf32> to vector<128x32xf32>
    %9 = arith.addf %6, %8 : vector<128x32xf32>
    %cst_9 = arith.constant 0.000000e+00 : f32
    %10 = vector.broadcast %cst_9 : f32 to vector<128x32xf32>
    %11 = arith.maximumf %9, %10 : vector<128x32xf32>
    %cst_10 = arith.constant 0.000000e+00 : f32
    %12 = vector.broadcast %cst_10 : f32 to vector<128x32xf32>
    %c9_i32 = arith.constant 9 : i32
    %13 = tpu.dynamic_rotate %11 by %c9_i32 dim 0 : vector<128x32xf32>, i32 -> vector<128x32xf32>
    %c0_11 = arith.constant 0 : index
    %c0_12 = arith.constant 0 : index
    %c0_13 = arith.constant 0 : index
    %14 = vector.load %arg2[%c0_11, %c0_12, %c0_13] : memref<9x128x1xf32, #tpu.memory_space<vmem>>, vector<1x128x1xf32>
    %15 = vector.shape_cast %14 : vector<1x128x1xf32> to vector<128x1xf32>
    %16 = vector.broadcast %15 : vector<128x1xf32> to vector<128x32xf32>
    %17 = arith.mulf %13, %16 : vector<128x32xf32>
    %18 = arith.truncf %17 : vector<128x32xf32> to vector<128x32xbf16>
    %c0_14 = arith.constant 0 : index
    %c0_15 = arith.constant 0 : index
    %c0_16 = arith.constant 0 : index
    %19 = vector.load %arg6[%c0_14, %c0_15, %c0_16] : memref<9x32x32xbf16, #tpu.memory_space<vmem>>, vector<1x32x32xbf16>
    %20 = vector.shape_cast %19 : vector<1x32x32xbf16> to vector<32x32xbf16>
    %cst_17 = arith.constant dense<0.000000e+00> : vector<128x32xf32>
    %21 = tpu.matmul %18, %20, %cst_17 {dimension_numbers = #tpu.dot_dimension_numbers<[1], [0], [0], [1], [0, 0, 1, 1], [], []>} : vector<128x32xbf16>, vector<32x32xbf16>, vector<128x32xf32> -> vector<128x32xf32>
    %22 = arith.addf %12, %21 : vector<128x32xf32>
    %c8_i32 = arith.constant 8 : i32
    %23 = tpu.dynamic_rotate %11 by %c8_i32 dim 0 : vector<128x32xf32>, i32 -> vector<128x32xf32>
    %c1 = arith.constant 1 : index
    %c0_18 = arith.constant 0 : index
    %c0_19 = arith.constant 0 : index
    %24 = vector.load %arg2[%c1, %c0_18, %c0_19] : memref<9x128x1xf32, #tpu.memory_space<vmem>>, vector<1x128x1xf32>
    %25 = vector.shape_cast %24 : vector<1x128x1xf32> to vector<128x1xf32>
    %26 = vector.broadcast %25 : vector<128x1xf32> to vector<128x32xf32>
    %27 = arith.mulf %23, %26 : vector<128x32xf32>
    %28 = arith.truncf %27 : vector<128x32xf32> to vector<128x32xbf16>
    %c1_20 = arith.constant 1 : index
    %c0_21 = arith.constant 0 : index
    %c0_22 = arith.constant 0 : index
    %29 = vector.load %arg6[%c1_20, %c0_21, %c0_22] : memref<9x32x32xbf16, #tpu.memory_space<vmem>>, vector<1x32x32xbf16>
    %30 = vector.shape_cast %29 : vector<1x32x32xbf16> to vector<32x32xbf16>
    %cst_23 = arith.constant dense<0.000000e+00> : vector<128x32xf32>
    %31 = tpu.matmul %28, %30, %cst_23 {dimension_numbers = #tpu.dot_dimension_numbers<[1], [0], [0], [1], [0, 0, 1, 1], [], []>} : vector<128x32xbf16>, vector<32x32xbf16>, vector<128x32xf32> -> vector<128x32xf32>
    %32 = arith.addf %22, %31 : vector<128x32xf32>
    %c7_i32 = arith.constant 7 : i32
    %33 = tpu.dynamic_rotate %11 by %c7_i32 dim 0 : vector<128x32xf32>, i32 -> vector<128x32xf32>
    %c2 = arith.constant 2 : index
    %c0_24 = arith.constant 0 : index
    %c0_25 = arith.constant 0 : index
    %34 = vector.load %arg2[%c2, %c0_24, %c0_25] : memref<9x128x1xf32, #tpu.memory_space<vmem>>, vector<1x128x1xf32>
    %35 = vector.shape_cast %34 : vector<1x128x1xf32> to vector<128x1xf32>
    %36 = vector.broadcast %35 : vector<128x1xf32> to vector<128x32xf32>
    %37 = arith.mulf %33, %36 : vector<128x32xf32>
    %38 = arith.truncf %37 : vector<128x32xf32> to vector<128x32xbf16>
    %c2_26 = arith.constant 2 : index
    %c0_27 = arith.constant 0 : index
    %c0_28 = arith.constant 0 : index
    %39 = vector.load %arg6[%c2_26, %c0_27, %c0_28] : memref<9x32x32xbf16, #tpu.memory_space<vmem>>, vector<1x32x32xbf16>
    %40 = vector.shape_cast %39 : vector<1x32x32xbf16> to vector<32x32xbf16>
    %cst_29 = arith.constant dense<0.000000e+00> : vector<128x32xf32>
    %41 = tpu.matmul %38, %40, %cst_29 {dimension_numbers = #tpu.dot_dimension_numbers<[1], [0], [0], [1], [0, 0, 1, 1], [], []>} : vector<128x32xbf16>, vector<32x32xbf16>, vector<128x32xf32> -> vector<128x32xf32>
    %42 = arith.addf %32, %41 : vector<128x32xf32>
    %c1_i32 = arith.constant 1 : i32
    %43 = tpu.dynamic_rotate %11 by %c1_i32 dim 0 : vector<128x32xf32>, i32 -> vector<128x32xf32>
    %c3 = arith.constant 3 : index
    %c0_30 = arith.constant 0 : index
    %c0_31 = arith.constant 0 : index
    %44 = vector.load %arg2[%c3, %c0_30, %c0_31] : memref<9x128x1xf32, #tpu.memory_space<vmem>>, vector<1x128x1xf32>
    %45 = vector.shape_cast %44 : vector<1x128x1xf32> to vector<128x1xf32>
    %46 = vector.broadcast %45 : vector<128x1xf32> to vector<128x32xf32>
    %47 = arith.mulf %43, %46 : vector<128x32xf32>
    %48 = arith.truncf %47 : vector<128x32xf32> to vector<128x32xbf16>
    %c3_32 = arith.constant 3 : index
    %c0_33 = arith.constant 0 : index
    %c0_34 = arith.constant 0 : index
    %49 = vector.load %arg6[%c3_32, %c0_33, %c0_34] : memref<9x32x32xbf16, #tpu.memory_space<vmem>>, vector<1x32x32xbf16>
    %50 = vector.shape_cast %49 : vector<1x32x32xbf16> to vector<32x32xbf16>
    %cst_35 = arith.constant dense<0.000000e+00> : vector<128x32xf32>
    %51 = tpu.matmul %48, %50, %cst_35 {dimension_numbers = #tpu.dot_dimension_numbers<[1], [0], [0], [1], [0, 0, 1, 1], [], []>} : vector<128x32xbf16>, vector<32x32xbf16>, vector<128x32xf32> -> vector<128x32xf32>
    %52 = arith.addf %42, %51 : vector<128x32xf32>
    %53 = arith.truncf %11 : vector<128x32xf32> to vector<128x32xbf16>
    %c4 = arith.constant 4 : index
    %c0_36 = arith.constant 0 : index
    %c0_37 = arith.constant 0 : index
    %54 = vector.load %arg6[%c4, %c0_36, %c0_37] : memref<9x32x32xbf16, #tpu.memory_space<vmem>>, vector<1x32x32xbf16>
    %55 = vector.shape_cast %54 : vector<1x32x32xbf16> to vector<32x32xbf16>
    %cst_38 = arith.constant dense<0.000000e+00> : vector<128x32xf32>
    %56 = tpu.matmul %53, %55, %cst_38 {dimension_numbers = #tpu.dot_dimension_numbers<[1], [0], [0], [1], [0, 0, 1, 1], [], []>} : vector<128x32xbf16>, vector<32x32xbf16>, vector<128x32xf32> -> vector<128x32xf32>
    %57 = arith.addf %52, %56 : vector<128x32xf32>
    %c127_i32 = arith.constant 127 : i32
    %58 = tpu.dynamic_rotate %11 by %c127_i32 dim 0 : vector<128x32xf32>, i32 -> vector<128x32xf32>
    %c5 = arith.constant 5 : index
    %c0_39 = arith.constant 0 : index
    %c0_40 = arith.constant 0 : index
    %59 = vector.load %arg2[%c5, %c0_39, %c0_40] : memref<9x128x1xf32, #tpu.memory_space<vmem>>, vector<1x128x1xf32>
    %60 = vector.shape_cast %59 : vector<1x128x1xf32> to vector<128x1xf32>
    %61 = vector.broadcast %60 : vector<128x1xf32> to vector<128x32xf32>
    %62 = arith.mulf %58, %61 : vector<128x32xf32>
    %63 = arith.truncf %62 : vector<128x32xf32> to vector<128x32xbf16>
    %c5_41 = arith.constant 5 : index
    %c0_42 = arith.constant 0 : index
    %c0_43 = arith.constant 0 : index
    %64 = vector.load %arg6[%c5_41, %c0_42, %c0_43] : memref<9x32x32xbf16, #tpu.memory_space<vmem>>, vector<1x32x32xbf16>
    %65 = vector.shape_cast %64 : vector<1x32x32xbf16> to vector<32x32xbf16>
    %cst_44 = arith.constant dense<0.000000e+00> : vector<128x32xf32>
    %66 = tpu.matmul %63, %65, %cst_44 {dimension_numbers = #tpu.dot_dimension_numbers<[1], [0], [0], [1], [0, 0, 1, 1], [], []>} : vector<128x32xbf16>, vector<32x32xbf16>, vector<128x32xf32> -> vector<128x32xf32>
    %67 = arith.addf %57, %66 : vector<128x32xf32>
    %c121_i32 = arith.constant 121 : i32
    %68 = tpu.dynamic_rotate %11 by %c121_i32 dim 0 : vector<128x32xf32>, i32 -> vector<128x32xf32>
    %c6 = arith.constant 6 : index
    %c0_45 = arith.constant 0 : index
    %c0_46 = arith.constant 0 : index
    %69 = vector.load %arg2[%c6, %c0_45, %c0_46] : memref<9x128x1xf32, #tpu.memory_space<vmem>>, vector<1x128x1xf32>
    %70 = vector.shape_cast %69 : vector<1x128x1xf32> to vector<128x1xf32>
    %71 = vector.broadcast %70 : vector<128x1xf32> to vector<128x32xf32>
    %72 = arith.mulf %68, %71 : vector<128x32xf32>
    %73 = arith.truncf %72 : vector<128x32xf32> to vector<128x32xbf16>
    %c6_47 = arith.constant 6 : index
    %c0_48 = arith.constant 0 : index
    %c0_49 = arith.constant 0 : index
    %74 = vector.load %arg6[%c6_47, %c0_48, %c0_49] : memref<9x32x32xbf16, #tpu.memory_space<vmem>>, vector<1x32x32xbf16>
    %75 = vector.shape_cast %74 : vector<1x32x32xbf16> to vector<32x32xbf16>
    %cst_50 = arith.constant dense<0.000000e+00> : vector<128x32xf32>
    %76 = tpu.matmul %73, %75, %cst_50 {dimension_numbers = #tpu.dot_dimension_numbers<[1], [0], [0], [1], [0, 0, 1, 1], [], []>} : vector<128x32xbf16>, vector<32x32xbf16>, vector<128x32xf32> -> vector<128x32xf32>
    %77 = arith.addf %67, %76 : vector<128x32xf32>
    %c120_i32 = arith.constant 120 : i32
    %78 = tpu.dynamic_rotate %11 by %c120_i32 dim 0 : vector<128x32xf32>, i32 -> vector<128x32xf32>
    %c7 = arith.constant 7 : index
    %c0_51 = arith.constant 0 : index
    %c0_52 = arith.constant 0 : index
    %79 = vector.load %arg2[%c7, %c0_51, %c0_52] : memref<9x128x1xf32, #tpu.memory_space<vmem>>, vector<1x128x1xf32>
    %80 = vector.shape_cast %79 : vector<1x128x1xf32> to vector<128x1xf32>
    %81 = vector.broadcast %80 : vector<128x1xf32> to vector<128x32xf32>
    %82 = arith.mulf %78, %81 : vector<128x32xf32>
    %83 = arith.truncf %82 : vector<128x32xf32> to vector<128x32xbf16>
    %c7_53 = arith.constant 7 : index
    %c0_54 = arith.constant 0 : index
    %c0_55 = arith.constant 0 : index
    %84 = vector.load %arg6[%c7_53, %c0_54, %c0_55] : memref<9x32x32xbf16, #tpu.memory_space<vmem>>, vector<1x32x32xbf16>
    %85 = vector.shape_cast %84 : vector<1x32x32xbf16> to vector<32x32xbf16>
    %cst_56 = arith.constant dense<0.000000e+00> : vector<128x32xf32>
    %86 = tpu.matmul %83, %85, %cst_56 {dimension_numbers = #tpu.dot_dimension_numbers<[1], [0], [0], [1], [0, 0, 1, 1], [], []>} : vector<128x32xbf16>, vector<32x32xbf16>, vector<128x32xf32> -> vector<128x32xf32>
    %87 = arith.addf %77, %86 : vector<128x32xf32>
    %c119_i32 = arith.constant 119 : i32
    %88 = tpu.dynamic_rotate %11 by %c119_i32 dim 0 : vector<128x32xf32>, i32 -> vector<128x32xf32>
    %c8 = arith.constant 8 : index
    %c0_57 = arith.constant 0 : index
    %c0_58 = arith.constant 0 : index
    %89 = vector.load %arg2[%c8, %c0_57, %c0_58] : memref<9x128x1xf32, #tpu.memory_space<vmem>>, vector<1x128x1xf32>
    %90 = vector.shape_cast %89 : vector<1x128x1xf32> to vector<128x1xf32>
    %91 = vector.broadcast %90 : vector<128x1xf32> to vector<128x32xf32>
    %92 = arith.mulf %88, %91 : vector<128x32xf32>
    %93 = arith.truncf %92 : vector<128x32xf32> to vector<128x32xbf16>
    %c8_59 = arith.constant 8 : index
    %c0_60 = arith.constant 0 : index
    %c0_61 = arith.constant 0 : index
    %94 = vector.load %arg6[%c8_59, %c0_60, %c0_61] : memref<9x32x32xbf16, #tpu.memory_space<vmem>>, vector<1x32x32xbf16>
    %95 = vector.shape_cast %94 : vector<1x32x32xbf16> to vector<32x32xbf16>
    %cst_62 = arith.constant dense<0.000000e+00> : vector<128x32xf32>
    %96 = tpu.matmul %93, %95, %cst_62 {dimension_numbers = #tpu.dot_dimension_numbers<[1], [0], [0], [1], [0, 0, 1, 1], [], []>} : vector<128x32xbf16>, vector<32x32xbf16>, vector<128x32xf32> -> vector<128x32xf32>
    %97 = arith.addf %87, %96 : vector<128x32xf32>
    %c0_63 = arith.constant 0 : index
    %c0_64 = arith.constant 0 : index
    %98 = vector.load %arg7[%c0_63, %c0_64] : memref<1x32xf32, #tpu.memory_space<vmem>>, vector<1x32xf32>
    %99 = vector.broadcast %98 : vector<1x32xf32> to vector<128x32xf32>
    %100 = arith.mulf %97, %99 : vector<128x32xf32>
    %c0_65 = arith.constant 0 : index
    %c0_66 = arith.constant 0 : index
    %101 = vector.load %arg8[%c0_65, %c0_66] : memref<1x32xf32, #tpu.memory_space<vmem>>, vector<1x32xf32>
    %102 = vector.broadcast %101 : vector<1x32xf32> to vector<128x32xf32>
    %103 = arith.addf %100, %102 : vector<128x32xf32>
    %cst_67 = arith.constant 0.000000e+00 : f32
    %104 = vector.broadcast %cst_67 : f32 to vector<128x32xf32>
    %105 = arith.maximumf %103, %104 : vector<128x32xf32>
    %106 = arith.truncf %105 : vector<128x32xf32> to vector<128x32xbf16>
    %c0_68 = arith.constant 0 : index
    %c0_69 = arith.constant 0 : index
    %107 = vector.load %arg9[%c0_68, %c0_69] : memref<32x128xbf16, #tpu.memory_space<vmem>>, vector<32x128xbf16>
    %cst_70 = arith.constant dense<0.000000e+00> : vector<128x128xf32>
    %108 = tpu.matmul %106, %107, %cst_70 {dimension_numbers = #tpu.dot_dimension_numbers<[1], [0], [0], [1], [0, 0, 1, 1], [], []>} : vector<128x32xbf16>, vector<32x128xbf16>, vector<128x128xf32> -> vector<128x128xf32>
    %c0_71 = arith.constant 0 : index
    %c0_72 = arith.constant 0 : index
    %109 = vector.load %arg10[%c0_71, %c0_72] : memref<1x128xf32, #tpu.memory_space<vmem>>, vector<1x128xf32>
    %110 = vector.broadcast %109 : vector<1x128xf32> to vector<128x128xf32>
    %111 = arith.mulf %108, %110 : vector<128x128xf32>
    %c0_73 = arith.constant 0 : index
    %c0_74 = arith.constant 0 : index
    %112 = vector.load %arg11[%c0_73, %c0_74] : memref<1x128xf32, #tpu.memory_space<vmem>>, vector<1x128xf32>
    %113 = vector.broadcast %112 : vector<1x128xf32> to vector<128x128xf32>
    %114 = arith.addf %111, %113 : vector<128x128xf32>
    %c0_75 = arith.constant 0 : index
    %c0_76 = arith.constant 0 : index
    %c0_77 = arith.constant 0 : index
    %c0_78 = arith.constant 0 : index
    %115 = vector.load %arg1[%c0_75, %c0_76, %c0_77, %c0_78] : memref<2x8x8x64xbf16, #tpu.memory_space<vmem>>, vector<2x8x8x64xbf16>
    %116 = vector.shape_cast %115 : vector<2x8x8x64xbf16> to vector<128x64xbf16>
    %c0_79 = arith.constant 0 : index
    %c0_80 = arith.constant 0 : index
    %117 = vector.load %arg12[%c0_79, %c0_80] : memref<64x128xbf16, #tpu.memory_space<vmem>>, vector<64x128xbf16>
    %cst_81 = arith.constant dense<0.000000e+00> : vector<128x128xf32>
    %118 = tpu.matmul %116, %117, %cst_81 {dimension_numbers = #tpu.dot_dimension_numbers<[1], [0], [0], [1], [0, 0, 1, 1], [], []>} : vector<128x64xbf16>, vector<64x128xbf16>, vector<128x128xf32> -> vector<128x128xf32>
    %c0_82 = arith.constant 0 : index
    %c0_83 = arith.constant 0 : index
    %119 = vector.load %arg13[%c0_82, %c0_83] : memref<1x128xf32, #tpu.memory_space<vmem>>, vector<1x128xf32>
    %120 = vector.broadcast %119 : vector<1x128xf32> to vector<128x128xf32>
    %121 = arith.mulf %118, %120 : vector<128x128xf32>
    %c0_84 = arith.constant 0 : index
    %c0_85 = arith.constant 0 : index
    %122 = vector.load %arg14[%c0_84, %c0_85] : memref<1x128xf32, #tpu.memory_space<vmem>>, vector<1x128xf32>
    %123 = vector.broadcast %122 : vector<1x128xf32> to vector<128x128xf32>
    %124 = arith.addf %121, %123 : vector<128x128xf32>
    %125 = arith.addf %114, %124 : vector<128x128xf32>
    %cst_86 = arith.constant 0.000000e+00 : f32
    %126 = vector.broadcast %cst_86 : f32 to vector<128x128xf32>
    %127 = arith.maximumf %125, %126 : vector<128x128xf32>
    %128 = vector.shape_cast %127 : vector<128x128xf32> to vector<2x8x8x128xf32>
    %c0_87 = arith.constant 0 : index
    %c0_88 = arith.constant 0 : index
    %c0_89 = arith.constant 0 : index
    %c0_90 = arith.constant 0 : index
    %129 = vector.load %arg15[%c0_87, %c0_88, %c0_89, %c0_90] : memref<2x8x8x128xf32, #tpu.memory_space<vmem>>, vector<2x8x8x128xf32>
    tpu.vector_store %arg15[%c0_87, %c0_88, %c0_89, %c0_90], %128 {strides = array<i32>} : memref<2x8x8x128xf32, #tpu.memory_space<vmem>>, vector<2x8x8x128xf32>,
    return
  }
  func.func @transform_0(%arg0: i32) -> (i32, i32, i32, i32) {
    %c0_i32 = arith.constant 0 : i32
    %c0_i32_0 = arith.constant 0 : i32
    %c0_i32_1 = arith.constant 0 : i32
    %c0_i32_2 = arith.constant 0 : i32
    return %arg0, %c0_i32, %c0_i32_0, %c0_i32_1 : i32, i32, i32, i32
  }
  func.func @transform_1(%arg0: i32) -> (i32, i32, i32) {
    %c0_i32 = arith.constant 0 : i32
    %c0_i32_0 = arith.constant 0 : i32
    %c0_i32_1 = arith.constant 0 : i32
    %c0_i32_2 = arith.constant 0 : i32
    return %c0_i32, %c0_i32_0, %c0_i32_1 : i32, i32, i32
  }
  func.func @transform_2(%arg0: i32) -> (i32, i32) {
    %c0_i32 = arith.constant 0 : i32
    %c0_i32_0 = arith.constant 0 : i32
    %c0_i32_1 = arith.constant 0 : i32
    return %c0_i32, %c0_i32_0 : i32, i32
  }
  func.func @transform_3(%arg0: i32) -> (i32, i32) {
    %c0_i32 = arith.constant 0 : i32
    %c0_i32_0 = arith.constant 0 : i32
    %c0_i32_1 = arith.constant 0 : i32
    return %c0_i32, %c0_i32_0 : i32, i32
  }
  func.func @transform_4(%arg0: i32) -> (i32, i32) {
    %c0_i32 = arith.constant 0 : i32
    %c0_i32_0 = arith.constant 0 : i32
    %c0_i32_1 = arith.constant 0 : i32
    return %c0_i32, %c0_i32_0 : i32, i32
  }
  func.func @transform_5(%arg0: i32) -> (i32, i32, i32) {
    %c0_i32 = arith.constant 0 : i32
    %c0_i32_0 = arith.constant 0 : i32
    %c0_i32_1 = arith.constant 0 : i32
    %c0_i32_2 = arith.constant 0 : i32
    return %c0_i32, %c0_i32_0, %c0_i32_1 : i32, i32, i32
  }
  func.func @transform_6(%arg0: i32) -> (i32, i32) {
    %c0_i32 = arith.constant 0 : i32
    %c0_i32_0 = arith.constant 0 : i32
    %c0_i32_1 = arith.constant 0 : i32
    return %c0_i32, %c0_i32_0 : i32, i32
  }
  func.func @transform_7(%arg0: i32) -> (i32, i32) {
    %c0_i32 = arith.constant 0 : i32
    %c0_i32_0 = arith.constant 0 : i32
    %c0_i32_1 = arith.constant 0 : i32
    return %c0_i32, %c0_i32_0 : i32, i32
  }
  func.func @transform_8(%arg0: i32) -> (i32, i32) {
    %c0_i32 = arith.constant 0 : i32
    %c0_i32_0 = arith.constant 0 : i32
    %c0_i32_1 = arith.constant 0 : i32
    return %c0_i32, %c0_i32_0 : i32, i32
  }
  func.func @transform_9(%arg0: i32) -> (i32, i32) {
    %c0_i32 = arith.constant 0 : i32
    %c0_i32_0 = arith.constant 0 : i32
    %c0_i32_1 = arith.constant 0 : i32
    return %c0_i32, %c0_i32_0 : i32, i32
  }
  func.func @transform_10(%arg0: i32) -> (i32, i32) {
    %c0_i32 = arith.constant 0 : i32
    %c0_i32_0 = arith.constant 0 : i32
    %c0_i32_1 = arith.constant 0 : i32
    return %c0_i32, %c0_i32_0 : i32, i32
  }
  func.func @transform_11(%arg0: i32) -> (i32, i32) {
    %c0_i32 = arith.constant 0 : i32
    %c0_i32_0 = arith.constant 0 : i32
    %c0_i32_1 = arith.constant 0 : i32
    return %c0_i32, %c0_i32_0 : i32, i32
  }
  func.func @transform_12(%arg0: i32) -> (i32, i32) {
    %c0_i32 = arith.constant 0 : i32
    %c0_i32_0 = arith.constant 0 : i32
    %c0_i32_1 = arith.constant 0 : i32
    return %c0_i32, %c0_i32_0 : i32, i32
  }
  func.func @transform_13(%arg0: i32) -> (i32, i32) {
    %c0_i32 = arith.constant 0 : i32
    %c0_i32_0 = arith.constant 0 : i32
    %c0_i32_1 = arith.constant 0 : i32
    return %c0_i32, %c0_i32_0 : i32, i32
  }
  func.func @transform_14(%arg0: i32) -> (i32, i32, i32, i32) {
    %c0_i32 = arith.constant 0 : i32
    %c0_i32_0 = arith.constant 0 : i32
    %c0_i32_1 = arith.constant 0 : i32
    %c0_i32_2 = arith.constant 0 : i32
    return %arg0, %c0_i32, %c0_i32_0, %c0_i32_1 : i32, i32, i32, i32
  }
}

</mosaic_0001>

<llo_original>
// kernel: tpu_custom_call.1
$region0: #{tpu_custom_call.1}
  #allocation0 [shape = 'u32[]', space=smem, size = 0x4, offset = 0x4, fixed_abs, tag = 'smem constant byte address 0x4 - core index']
  #allocation1 [shape = 'u32[72,128]{1,0:T(1,128)}', space=vmem, size = 0x9000, scoped, tag = 'internal scratch']
  %s0 = inlined_call_operand.vmem [shape: bf16[4,8,8,64], index: 0, kind: input, shape index: {}]
  %s1 = inlined_call_operand.vmem [shape: f32[9,128,1], index: 1, kind: input, shape index: {}]
  %s2 = inlined_call_operand.vmem [shape: bf16[64,32], index: 2, kind: input, shape index: {}]
  %s3 = inlined_call_operand.vmem [shape: f32[1,32], index: 3, kind: input, shape index: {}]
  %s4 = inlined_call_operand.vmem [shape: f32[1,32], index: 4, kind: input, shape index: {}]
  %s5 = inlined_call_operand.vmem [shape: bf16[9,32,32], index: 5, kind: input, shape index: {}]
  %s6 = inlined_call_operand.vmem [shape: f32[1,32], index: 6, kind: input, shape index: {}]
  %s7 = inlined_call_operand.vmem [shape: f32[1,32], index: 7, kind: input, shape index: {}]
  %s8 = inlined_call_operand.vmem [shape: bf16[32,128], index: 8, kind: input, shape index: {}]
  %s9 = inlined_call_operand.vmem [shape: f32[1,128], index: 9, kind: input, shape index: {}]
  %s10 = inlined_call_operand.vmem [shape: f32[1,128], index: 10, kind: input, shape index: {}]
  %s11 = inlined_call_operand.vmem [shape: bf16[64,128], index: 11, kind: input, shape index: {}]
  %s12 = inlined_call_operand.vmem [shape: f32[1,128], index: 12, kind: input, shape index: {}]
  %s13 = inlined_call_operand.vmem [shape: f32[1,128], index: 13, kind: input, shape index: {}]
  %s14 = inlined_call_operand.hbm [shape: f32[4,8,8,128], index: 14, kind: output, shape index: {}]
  %s15 = sld [smem:[#allocation0]]
  $region89: #{tpu_custom_call.1} parent=0
    _
  %s17 = ssub.s32 1, %s15
  %s18 = scalar_select 0, %s17, %s15
  $region1: #{tpu_custom_call.1} parent=0
    #allocation2 [shape = 'u8[131072]{0}', space=vmem, size = 0x20000, scoped, tag = 'output window, operand 0']
    #allocation3 [shape = 's32[2]{0}', space=sflag, size = 0x8, scoped, tag = 'scoped memory for tpu_custom_call.1']
    %19 = vsyncpa [#allocation3], 0
    %s20 = scalar_lea.sflag [#allocation3], 1
    %21 = vsyncpa %s20, 0
    loop: start=0, step=1, limit=4
    $region2: #{tpu_custom_call.1} parent=1 // loop_pre_header
      _
    $region3: #{tpu_custom_call.1} parent=1 // loop_header
      %s23 = sphi 0, %s27
      %p24 = scmp.ge.s32.totalorder %s23, 4
      %s33 = sphi 0, %s35
      %s36 = sphi 0, %s33
      %s37 = sphi 0, %s36
      %s53 = sphi 0, %s37
      %s57 = sphi 0, %s57
      %s59 = sphi 0, %s57
      %s60 = sphi 0, %s59
      %s74 = sphi 0, %s60
      %s78 = sphi 0, %s78
      %s80 = sphi 0, %s78
      %s81 = sphi 0, %s80
      %s95 = sphi 0, %s81
      %s99 = sphi 0, %s99
      %s101 = sphi 0, %s99
      %s102 = sphi 0, %s101
      %s116 = sphi 0, %s102
      %s120 = sphi 0, %s120
      %s122 = sphi 0, %s120
      %s123 = sphi 0, %s122
      %s137 = sphi 0, %s123
      %s141 = sphi 0, %s141
      %s143 = sphi 0, %s141
      %s144 = sphi 0, %s143
      %s158 = sphi 0, %s144
      %s162 = sphi 0, %s162
      %s164 = sphi 0, %s162
      %s165 = sphi 0, %s164
      %s179 = sphi 0, %s165
      %s183 = sphi 0, %s183
      %s185 = sphi 0, %s183
      %s186 = sphi 0, %s185
      %s200 = sphi 0, %s186
      %s204 = sphi 0, %s204
      %s206 = sphi 0, %s204
      %s207 = sphi 0, %s206
      %s221 = sphi 0, %s207
      %s225 = sphi 0, %s225
      %s227 = sphi 0, %s225
      %s228 = sphi 0, %s227
      %s242 = sphi 0, %s228
      %s246 = sphi 0, %s246
      %s248 = sphi 0, %s246
      %s249 = sphi 0, %s248
      %s263 = sphi 0, %s249
      %s267 = sphi 0, %s267
      %s269 = sphi 0, %s267
      %s270 = sphi 0, %s269
      %s284 = sphi 0, %s270
      %s288 = sphi 0, %s288
      %s290 = sphi 0, %s288
      %s291 = sphi 0, %s290
      %s305 = sphi 0, %s291
      %s309 = sphi 0, %s309
      %s311 = sphi 0, %s309
      %s312 = sphi 0, %s311
      %s326 = sphi 0, %s312
      %s332 = sphi 0, %s334
      %s335 = sphi 0, %s332
      %s336 = sphi 0, %s335
      %s352 = sphi 0, %s336
    $region4: #{tpu_custom_call.1} parent=1 // loop_header_branch
      %26 = sbr.rel (%p24) target = $region8
    $region5: #{tpu_custom_call.1} parent=1 // loop_body
      %s28 = ssub.s32 %s23, 1
      %s29 = ssub.s32 %s23, 2
      %s30 = sadd.s32 %s23, 1
      %s31 = ssub.s32 %s23, %s30
      %p32 = scmp.eq.s32.totalorder %s31, 0
      %s34 = sadd.s32 %s33, 1
      %s35 = scalar_select %p32, %s33, %s34
      %p38 = pneg %p32
      %p39 = scmp.eq.s32.totalorder %s23, 1
      %p40 = por %p38, %p39
      %p41 = scmp.ne.s32.totalorder %s33, %s36
      %p42 = scmp.eq.s32.totalorder %s23, 0
      %p43 = por %p41, %p42
      %p44 = scmp.ne.s32.totalorder %s33, %s36
      %p45 = scmp.eq.s32.totalorder %s28, 1
      %p46 = por %p44, %p45
      %p47 = scmp.ne.s32.totalorder %s36, %s37
      %p48 = scmp.eq.s32.totalorder %s28, 0
      %p49 = por %p47, %p48
      %p50 = scmp.ne.s32.totalorder %s36, %s37
      %p51 = scmp.eq.s32.totalorder %s29, 1
      %p52 = por %p50, %p51
      %p54 = scmp.ne.s32.totalorder %s37, %s53
      %p55 = scmp.eq.s32.totalorder %s29, 0
      %p56 = por %p54, %p55
      %s58 = sadd.s32 %s57, 1
      %p61 = scmp.eq.s32.totalorder %s23, 1
      %p62 = scmp.ne.s32.totalorder %s57, %s59
      %p63 = scmp.eq.s32.totalorder %s23, 0
      %p64 = por %p62, %p63
      %p65 = scmp.ne.s32.totalorder %s57, %s59
      %p66 = scmp.eq.s32.totalorder %s28, 1
      %p67 = por %p65, %p66
      %p68 = scmp.ne.s32.totalorder %s59, %s60
      %p69 = scmp.eq.s32.totalorder %s28, 0
      %p70 = por %p68, %p69
      %p71 = scmp.ne.s32.totalorder %s59, %s60
      %p72 = scmp.eq.s32.totalorder %s29, 1
      %p73 = por %p71, %p72
      %p75 = scmp.ne.s32.totalorder %s60, %s74
      %p76 = scmp.eq.s32.totalorder %s29, 0
      %p77 = por %p75, %p76
      %s79 = sadd.s32 %s78, 1
      %p82 = scmp.eq.s32.totalorder %s23, 1
      %p83 = scmp.ne.s32.totalorder %s78, %s80
      %p84 = scmp.eq.s32.totalorder %s23, 0
      %p85 = por %p83, %p84
      %p86 = scmp.ne.s32.totalorder %s78, %s80
      %p87 = scmp.eq.s32.totalorder %s28, 1
      %p88 = por %p86, %p87
      %p89 = scmp.ne.s32.totalorder %s80, %s81
      %p90 = scmp.eq.s32.totalorder %s28, 0
      %p91 = por %p89, %p90
      %p92 = scmp.ne.s32.totalorder %s80, %s81
      %p93 = scmp.eq.s32.totalorder %s29, 1
      %p94 = por %p92, %p93
      %p96 = scmp.ne.s32.totalorder %s81, %s95
      %p97 = scmp.eq.s32.totalorder %s29, 0
      %p98 = por %p96, %p97
      %s100 = sadd.s32 %s99, 1
      %p103 = scmp.eq.s32.totalorder %s23, 1
      %p104 = scmp.ne.s32.totalorder %s99, %s101
      %p105 = scmp.eq.s32.totalorder %s23, 0
      %p106 = por %p104, %p105
      %p107 = scmp.ne.s32.totalorder %s99, %s101
      %p108 = scmp.eq.s32.totalorder %s28, 1
      %p109 = por %p107, %p108
      %p110 = scmp.ne.s32.totalorder %s101, %s102
      %p111 = scmp.eq.s32.totalorder %s28, 0
      %p112 = por %p110, %p111
      %p113 = scmp.ne.s32.totalorder %s101, %s102
      %p114 = scmp.eq.s32.totalorder %s29, 1
      %p115 = por %p113, %p114
      %p117 = scmp.ne.s32.totalorder %s102, %s116
      %p118 = scmp.eq.s32.totalorder %s29, 0
      %p119 = por %p117, %p118
      %s121 = sadd.s32 %s120, 1
      %p124 = scmp.eq.s32.totalorder %s23, 1
      %p125 = scmp.ne.s32.totalorder %s120, %s122
      %p126 = scmp.eq.s32.totalorder %s23, 0
      %p127 = por %p125, %p126
      %p128 = scmp.ne.s32.totalorder %s120, %s122
      %p129 = scmp.eq.s32.totalorder %s28, 1
      %p130 = por %p128, %p129
      %p131 = scmp.ne.s32.totalorder %s122, %s123
      %p132 = scmp.eq.s32.totalorder %s28, 0
      %p133 = por %p131, %p132
      %p134 = scmp.ne.s32.totalorder %s122, %s123
      %p135 = scmp.eq.s32.totalorder %s29, 1
      %p136 = por %p134, %p135
      %p138 = scmp.ne.s32.totalorder %s123, %s137
      %p139 = scmp.eq.s32.totalorder %s29, 0
      %p140 = por %p138, %p139
      %s142 = sadd.s32 %s141, 1
      %p145 = scmp.eq.s32.totalorder %s23, 1
      %p146 = scmp.ne.s32.totalorder %s141, %s143
      %p147 = scmp.eq.s32.totalorder %s23, 0
      %p148 = por %p146, %p147
      %p149 = scmp.ne.s32.totalorder %s141, %s143
      %p150 = scmp.eq.s32.totalorder %s28, 1
      %p151 = por %p149, %p150
      %p152 = scmp.ne.s32.totalorder %s143, %s144
      %p153 = scmp.eq.s32.totalorder %s28, 0
      %p154 = por %p152, %p153
      %p155 = scmp.ne.s32.totalorder %s143, %s144
      %p156 = scmp.eq.s32.totalorder %s29, 1
      %p157 = por %p155, %p156
      %p159 = scmp.ne.s32.totalorder %s144, %s158
      %p160 = scmp.eq.s32.totalorder %s29, 0
      %p161 = por %p159, %p160
      %s163 = sadd.s32 %s162, 1
      %p166 = scmp.eq.s32.totalorder %s23, 1
      %p167 = scmp.ne.s32.totalorder %s162, %s164
      %p168 = scmp.eq.s32.totalorder %s23, 0
      %p169 = por %p167, %p168
      %p170 = scmp.ne.s32.totalorder %s162, %s164
      %p171 = scmp.eq.s32.totalorder %s28, 1
      %p172 = por %p170, %p171
      %p173 = scmp.ne.s32.totalorder %s164, %s165
      %p174 = scmp.eq.s32.totalorder %s28, 0
      %p175 = por %p173, %p174
      %p176 = scmp.ne.s32.totalorder %s164, %s165
      %p177 = scmp.eq.s32.totalorder %s29, 1
      %p178 = por %p176, %p177
      %p180 = scmp.ne.s32.totalorder %s165, %s179
      %p181 = scmp.eq.s32.totalorder %s29, 0
      %p182 = por %p180, %p181
      %s184 = sadd.s32 %s183, 1
      %p187 = scmp.eq.s32.totalorder %s23, 1
      %p188 = scmp.ne.s32.totalorder %s183, %s185
      %p189 = scmp.eq.s32.totalorder %s23, 0
      %p190 = por %p188, %p189
      %p191 = scmp.ne.s32.totalorder %s183, %s185
      %p192 = scmp.eq.s32.totalorder %s28, 1
      %p193 = por %p191, %p192
      %p194 = scmp.ne.s32.totalorder %s185, %s186
      %p195 = scmp.eq.s32.totalorder %s28, 0
      %p196 = por %p194, %p195
      %p197 = scmp.ne.s32.totalorder %s185, %s186
      %p198 = scmp.eq.s32.totalorder %s29, 1
      %p199 = por %p197, %p198
      %p201 = scmp.ne.s32.totalorder %s186, %s200
      %p202 = scmp.eq.s32.totalorder %s29, 0
      %p203 = por %p201, %p202
      %s205 = sadd.s32 %s204, 1
      %p208 = scmp.eq.s32.totalorder %s23, 1
      %p209 = scmp.ne.s32.totalorder %s204, %s206
      %p210 = scmp.eq.s32.totalorder %s23, 0
      %p211 = por %p209, %p210
      %p212 = scmp.ne.s32.totalorder %s204, %s206
      %p213 = scmp.eq.s32.totalorder %s28, 1
      %p214 = por %p212, %p213
      %p215 = scmp.ne.s32.totalorder %s206, %s207
      %p216 = scmp.eq.s32.totalorder %s28, 0
      %p217 = por %p215, %p216
      %p218 = scmp.ne.s32.totalorder %s206, %s207
      %p219 = scmp.eq.s32.totalorder %s29, 1
      %p220 = por %p218, %p219
      %p222 = scmp.ne.s32.totalorder %s207, %s221
      %p223 = scmp.eq.s32.totalorder %s29, 0
      %p224 = por %p222, %p223
      %s226 = sadd.s32 %s225, 1
      %p229 = scmp.eq.s32.totalorder %s23, 1
      %p230 = scmp.ne.s32.totalorder %s225, %s227
      %p231 = scmp.eq.s32.totalorder %s23, 0
      %p232 = por %p230, %p231
      %p233 = scmp.ne.s32.totalorder %s225, %s227
      %p234 = scmp.eq.s32.totalorder %s28, 1
      %p235 = por %p233, %p234
      %p236 = scmp.ne.s32.totalorder %s227, %s228
      %p237 = scmp.eq.s32.totalorder %s28, 0
      %p238 = por %p236, %p237
      %p239 = scmp.ne.s32.totalorder %s227, %s228
      %p240 = scmp.eq.s32.totalorder %s29, 1
      %p241 = por %p239, %p240
      %p243 = scmp.ne.s32.totalorder %s228, %s242
      %p244 = scmp.eq.s32.totalorder %s29, 0
      %p245 = por %p243, %p244
      %s247 = sadd.s32 %s246, 1
      %p250 = scmp.eq.s32.totalorder %s23, 1
      %p251 = scmp.ne.s32.totalorder %s246, %s248
      %p252 = scmp.eq.s32.totalorder %s23, 0
      %p253 = por %p251, %p252
      %p254 = scmp.ne.s32.totalorder %s246, %s248
      %p255 = scmp.eq.s32.totalorder %s28, 1
      %p256 = por %p254, %p255
      %p257 = scmp.ne.s32.totalorder %s248, %s249
      %p258 = scmp.eq.s32.totalorder %s28, 0
      %p259 = por %p257, %p258
      %p260 = scmp.ne.s32.totalorder %s248, %s249
      %p261 = scmp.eq.s32.totalorder %s29, 1
      %p262 = por %p260, %p261
      %p264 = scmp.ne.s32.totalorder %s249, %s263
      %p265 = scmp.eq.s32.totalorder %s29, 0
      %p266 = por %p264, %p265
      %s268 = sadd.s32 %s267, 1
      %p271 = scmp.eq.s32.totalorder %s23, 1
      %p272 = scmp.ne.s32.totalorder %s267, %s269
      %p273 = scmp.eq.s32.totalorder %s23, 0
      %p274 = por %p272, %p273
      %p275 = scmp.ne.s32.totalorder %s267, %s269
      %p276 = scmp.eq.s32.totalorder %s28, 1
      %p277 = por %p275, %p276
      %p278 = scmp.ne.s32.totalorder %s269, %s270
      %p279 = scmp.eq.s32.totalorder %s28, 0
      %p280 = por %p278, %p279
      %p281 = scmp.ne.s32.totalorder %s269, %s270
      %p282 = scmp.eq.s32.totalorder %s29, 1
      %p283 = por %p281, %p282
      %p285 = scmp.ne.s32.totalorder %s270, %s284
      %p286 = scmp.eq.s32.totalorder %s29, 0
      %p287 = por %p285, %p286
      %s289 = sadd.s32 %s288, 1
      %p292 = scmp.eq.s32.totalorder %s23, 1
      %p293 = scmp.ne.s32.totalorder %s288, %s290
      %p294 = scmp.eq.s32.totalorder %s23, 0
      %p295 = por %p293, %p294
      %p296 = scmp.ne.s32.totalorder %s288, %s290
      %p297 = scmp.eq.s32.totalorder %s28, 1
      %p298 = por %p296, %p297
      %p299 = scmp.ne.s32.totalorder %s290, %s291
      %p300 = scmp.eq.s32.totalorder %s28, 0
      %p301 = por %p299, %p300
      %p302 = scmp.ne.s32.totalorder %s290, %s291
      %p303 = scmp.eq.s32.totalorder %s29, 1
      %p304 = por %p302, %p303
      %p306 = scmp.ne.s32.totalorder %s291, %s305
      %p307 = scmp.eq.s32.totalorder %s29, 0
      %p308 = por %p306, %p307
      %s310 = sadd.s32 %s309, 1
      %p313 = scmp.eq.s32.totalorder %s23, 1
      %p314 = scmp.ne.s32.totalorder %s309, %s311
      %p315 = scmp.eq.s32.totalorder %s23, 0
      %p316 = por %p314, %p315
      %p317 = scmp.ne.s32.totalorder %s309, %s311
      %p318 = scmp.eq.s32.totalorder %s28, 1
      %p319 = por %p317, %p318
      %p320 = scmp.ne.s32.totalorder %s311, %s312
      %p321 = scmp.eq.s32.totalorder %s28, 0
      %p322 = por %p320, %p321
      %p323 = scmp.ne.s32.totalorder %s311, %s312
      %p324 = scmp.eq.s32.totalorder %s29, 1
      %p325 = por %p323, %p324
      %p327 = scmp.ne.s32.totalorder %s312, %s326
      %p328 = scmp.eq.s32.totalorder %s29, 0
      %p329 = por %p327, %p328
      %s330 = ssub.s32 %s23, %s30
      %p331 = scmp.eq.s32.totalorder %s330, 0
      %s333 = sadd.s32 %s332, 1
      %s334 = scalar_select %p331, %s332, %s333
      %p337 = pneg %p331
      %p338 = scmp.eq.s32.totalorder %s23, 1
      %p339 = por %p337, %p338
      %p340 = scmp.ne.s32.totalorder %s332, %s335
      %p341 = scmp.eq.s32.totalorder %s23, 0
      %p342 = por %p340, %p341
      %p343 = scmp.ne.s32.totalorder %s332, %s335
      %p344 = scmp.eq.s32.totalorder %s28, 1
      %p345 = por %p343, %p344
      %p346 = scmp.ne.s32.totalorder %s335, %s336
      %p347 = scmp.eq.s32.totalorder %s28, 0
      %p348 = por %p346, %p347
      %p349 = scmp.ne.s32.totalorder %s335, %s336
      %p350 = scmp.eq.s32.totalorder %s29, 1
      %p351 = por %p349, %p350
      %p353 = scmp.ne.s32.totalorder %s336, %s352
      %p354 = scmp.eq.s32.totalorder %s29, 0
      %p355 = por %p353, %p354
      %p356 = scmp.le.s32.totalorder 1, %s23
      %p357 = scmp.lt.s32.totalorder %s23, 3
      %p358 = pnand %p356, %p357
      %p359 = pneg %p358
      // Predicated region
      $region9: #{tpu_custom_call.1} parent=5 // pred_check
        _
      $region10: #{tpu_custom_call.1} parent=5 // pred_check_branch
        %361 = sbr.rel (%p358) target = $region12
      $region11: #{tpu_custom_call.1} parent=5 // pred_region
        %s362 = ssub.s32 %s23, 1
        // Predicated region
        $region13: #{tpu_custom_call.1} parent=11 // pred_check
          %p363 = pneg %p70
        $region14: #{tpu_custom_call.1} parent=11 // pred_check_branch
          %365 = sbr.rel (%p363) target = $region16
        $region15: #{tpu_custom_call.1} parent=11 // pred_region
          _
        $region16: #{tpu_custom_call.1} parent=11 // pred_fallthru
          _
        // Predicated region
        $region17: #{tpu_custom_call.1} parent=11 // pred_check
          %p366 = pneg %p91
        $region18: #{tpu_custom_call.1} parent=11 // pred_check_branch
          %368 = sbr.rel (%p366) target = $region20
        $region19: #{tpu_custom_call.1} parent=11 // pred_region
          _
        $region20: #{tpu_custom_call.1} parent=11 // pred_fallthru
          _
        // Predicated region
        $region21: #{tpu_custom_call.1} parent=11 // pred_check
          %p369 = pneg %p112
        $region22: #{tpu_custom_call.1} parent=11 // pred_check_branch
          %371 = sbr.rel (%p369) target = $region24
        $region23: #{tpu_custom_call.1} parent=11 // pred_region
          _
        $region24: #{tpu_custom_call.1} parent=11 // pred_fallthru
          _
        // Predicated region
        $region25: #{tpu_custom_call.1} parent=11 // pred_check
          %p372 = pneg %p133
        $region26: #{tpu_custom_call.1} parent=11 // pred_check_branch
          %374 = sbr.rel (%p372) target = $region28
        $region27: #{tpu_custom_call.1} parent=11 // pred_region
          _
        $region28: #{tpu_custom_call.1} parent=11 // pred_fallthru
          _
        // Predicated region
        $region29: #{tpu_custom_call.1} parent=11 // pred_check
          %p375 = pneg %p154
        $region30: #{tpu_custom_call.1} parent=11 // pred_check_branch
          %377 = sbr.rel (%p375) target = $region32
        $region31: #{tpu_custom_call.1} parent=11 // pred_region
          _
        $region32: #{tpu_custom_call.1} parent=11 // pred_fallthru
          _
        // Predicated region
        $region33: #{tpu_custom_call.1} parent=11 // pred_check
          %p378 = pneg %p175
        $region34: #{tpu_custom_call.1} parent=11 // pred_check_branch
          %380 = sbr.rel (%p378) target = $region36
        $region35: #{tpu_custom_call.1} parent=11 // pred_region
          _
        $region36: #{tpu_custom_call.1} parent=11 // pred_fallthru
          _
        // Predicated region
        $region37: #{tpu_custom_call.1} parent=11 // pred_check
          %p381 = pneg %p196
        $region38: #{tpu_custom_call.1} parent=11 // pred_check_branch
          %383 = sbr.rel (%p381) target = $region40
        $region39: #{tpu_custom_call.1} parent=11 // pred_region
          _
        $region40: #{tpu_custom_call.1} parent=11 // pred_fallthru
          _
        // Predicated region
        $region41: #{tpu_custom_call.1} parent=11 // pred_check
          %p384 = pneg %p217
        $region42: #{tpu_custom_call.1} parent=11 // pred_check_branch
          %386 = sbr.rel (%p384) target = $region44
        $region43: #{tpu_custom_call.1} parent=11 // pred_region
          _
        $region44: #{tpu_custom_call.1} parent=11 // pred_fallthru
          _
        // Predicated region
        $region45: #{tpu_custom_call.1} parent=11 // pred_check
          %p387 = pneg %p238
        $region46: #{tpu_custom_call.1} parent=11 // pred_check_branch
          %389 = sbr.rel (%p387) target = $region48
        $region47: #{tpu_custom_call.1} parent=11 // pred_region
          _
        $region48: #{tpu_custom_call.1} parent=11 // pred_fallthru
          _
        // Predicated region
        $region49: #{tpu_custom_call.1} parent=11 // pred_check
          %p390 = pneg %p259
        $region50: #{tpu_custom_call.1} parent=11 // pred_check_branch
          %392 = sbr.rel (%p390) target = $region52
        $region51: #{tpu_custom_call.1} parent=11 // pred_region
          _
        $region52: #{tpu_custom_call.1} parent=11 // pred_fallthru
          _
        // Predicated region
        $region53: #{tpu_custom_call.1} parent=11 // pred_check
          %p393 = pneg %p280
        $region54: #{tpu_custom_call.1} parent=11 // pred_check_branch
          %395 = sbr.rel (%p393) target = $region56
        $region55: #{tpu_custom_call.1} parent=11 // pred_region
          _
        $region56: #{tpu_custom_call.1} parent=11 // pred_fallthru
          _
        // Predicated region
        $region57: #{tpu_custom_call.1} parent=11 // pred_check
          %p396 = pneg %p301
        $region58: #{tpu_custom_call.1} parent=11 // pred_check_branch
          %398 = sbr.rel (%p396) target = $region60
        $region59: #{tpu_custom_call.1} parent=11 // pred_region
          _
        $region60: #{tpu_custom_call.1} parent=11 // pred_fallthru
          _
        // Predicated region
        $region61: #{tpu_custom_call.1} parent=11 // pred_check
          %p399 = pneg %p322
        $region62: #{tpu_custom_call.1} parent=11 // pred_check_branch
          %401 = sbr.rel (%p399) target = $region64
        $region63: #{tpu_custom_call.1} parent=11 // pred_region
          _
        $region64: #{tpu_custom_call.1} parent=11 // pred_fallthru
          _
      $region12: #{tpu_custom_call.1} parent=5 // pred_fallthru
        _
      %p402 = scmp.lt.s32.totalorder %s23, 2
      // Predicated region
      $region65: #{tpu_custom_call.1} parent=5 // pred_check
        %p403 = pneg %p402
      $region66: #{tpu_custom_call.1} parent=5 // pred_check_branch
        %405 = sbr.rel (%p403) target = $region68
      $region67: #{tpu_custom_call.1} parent=5 // pred_region
        // Predicated region
        $region69: #{tpu_custom_call.1} parent=67 // pred_check
          %p406 = pneg %p43
        $region70: #{tpu_custom_call.1} parent=67 // pred_check_branch
          %408 = sbr.rel (%p406) target = $region72
        $region71: #{tpu_custom_call.1} parent=67 // pred_region
          %s409 = smul.u32 2, %s23
          %p410 = scmp.lt.s32.totalorder %s409, 3
          %s411 = scalar_select %p410, %s409, 3
          %s412 = smul.addr %s411, 8
          %s413 = smul.addr %s412, 4
          %s414 = scalar_lea.vmem %s0, %s413
          %s415 = smul.u32 2, %s23
        $region72: #{tpu_custom_call.1} parent=67 // pred_fallthru
          _
      $region68: #{tpu_custom_call.1} parent=5 // pred_fallthru
        _
      %p416 = scmp.le.s32.totalorder 1, %s23
      %p417 = scmp.lt.s32.totalorder %s23, 3
      %p418 = pnand %p416, %p417
      %p419 = pneg %p418
      // Predicated region
      $region73: #{tpu_custom_call.1} parent=5 // pred_check
        _
      $region74: #{tpu_custom_call.1} parent=5 // pred_check_branch
        %421 = sbr.rel (%p418) target = $region76
      $region75: #{tpu_custom_call.1} parent=5 // pred_region
        %s422 = ssub.s32 %s23, 1
        %s423 = smul.u32 2, %s28
        %p424 = scmp.lt.s32.totalorder %s423, 3
        %s425 = scalar_select %p424, %s423, 3
        %s426 = smul.addr %s425, 8
        %s427 = smul.addr %s426, 4
        %s428 = scalar_lea.vmem %s0, %s427
        %p429 = pneg %p49
        %p430 = pneg %p46
        %p431 = pneg %p70
        %p432 = pneg %p67
        %p433 = pneg %p91
        %p434 = pneg %p88
        %p435 = pneg %p112
        %p436 = pneg %p109
        %p437 = pneg %p133
        %p438 = pneg %p130
        %p439 = pneg %p154
        %p440 = pneg %p151
        %p441 = pneg %p175
        %p442 = pneg %p172
        %p443 = pneg %p196
        %p444 = pneg %p193
        %p445 = pneg %p217
        %p446 = pneg %p214
        %p447 = pneg %p238
        %p448 = pneg %p235
        %p449 = pneg %p259
        %p450 = pneg %p256
        %p451 = pneg %p280
        %p452 = pneg %p277
        %p453 = pneg %p301
        %p454 = pneg %p298
        %p455 = pneg %p322
        %p456 = pneg %p319
        %p457 = pneg %p348
        %p458 = pneg %p345
        %s459 = sand.u32 %s335, 1
        %s460 = scalar_lea.sflag [#allocation3], %s459
        %s461 = sand.u32 %s335, 1
        %s462 = smul.addr %s461, 128
        %s463 = scalar_lea.vmem [#allocation2], %s462
        %s464 = smul.u32 2, %s28
        %p465 = scmp.lt.s32.totalorder %s464, 3
        %s466 = scalar_select %p465, %s464, 3
        %s467 = smul.addr %s466, 8
        %s468 = smul.addr %s467, 4
        %s469 = scalar_lea.vmem %s0, %s468
        %s470 = smul.u32 2, %s28
        %s471 = smul.u32 2, %s28
        %v473 = vld [vmem:[%s469] sm:$0xf]
        %v474 = vld [vmem:[%s469 + $0x4] sm:$0xf]
        %v475 = vld [vmem:[%s469 + $0x8] sm:$0xf]
        %v476 = vld [vmem:[%s469 + $0xc] sm:$0xf]
        %v477 = vld [vmem:[%s469 + $0x10] sm:$0xf]
        %v478 = vld [vmem:[%s469 + $0x14] sm:$0xf]
        %v479 = vld [vmem:[%s469 + $0x18] sm:$0xf]
        %v480 = vld [vmem:[%s469 + $0x1c] sm:$0xf]
        %v481 = vld [vmem:[%s469 + $0x20] sm:$0xf]
        %v482 = vld [vmem:[%s469 + $0x24] sm:$0xf]
        %v483 = vld [vmem:[%s469 + $0x28] sm:$0xf]
        %v484 = vld [vmem:[%s469 + $0x2c] sm:$0xf]
        %v485 = vld [vmem:[%s469 + $0x30] sm:$0xf]
        %v486 = vld [vmem:[%s469 + $0x34] sm:$0xf]
        %v487 = vld [vmem:[%s469 + $0x38] sm:$0xf]
        %v488 = vld [vmem:[%s469 + $0x3c] sm:$0xf]
        %v489 = vld [vmem:[%s2] sm:$0xf]
        %v490 = vld [vmem:[%s2 + $0x4] sm:$0xf]
        %v491 = vld [vmem:[%s2 + $0x8] sm:$0xf]
        %v492 = vld [vmem:[%s2 + $0xc] sm:$0xf]
        %v493 = vld [vmem:[%s2 + $0x10] sm:$0xf]
        %v494 = vld [vmem:[%s2 + $0x14] sm:$0xf]
        %v495 = vld [vmem:[%s2 + $0x18] sm:$0xf]
        %v496 = vld [vmem:[%s2 + $0x1c] sm:$0xf]
        %v513 = vunpack.c.l.b16 %v473
        %v514 = vunpack.c.l.b16 %v474
        %v515 = vunpack.c.l.b16 %v475
        %v516 = vunpack.c.l.b16 %v476
        %v517 = vunpack.c.l.b16 %v477
        %v518 = vunpack.c.l.b16 %v478
        %v519 = vunpack.c.l.b16 %v479
        %v520 = vunpack.c.l.b16 %v480
        %v521 = vunpack.c.l.b16 %v481
        %v522 = vunpack.c.l.b16 %v482
        %v523 = vunpack.c.l.b16 %v483
        %v524 = vunpack.c.l.b16 %v484
        %v525 = vunpack.c.l.b16 %v485
        %v526 = vunpack.c.l.b16 %v486
        %v527 = vunpack.c.l.b16 %v487
        %v528 = vunpack.c.l.b16 %v488
        %v529 = vpack.c.b16 %v514, %v513
        %v530 = vpack.c.b16 %v516, %v515
        %v531 = vpack.c.b16 %v518, %v517
        %v532 = vpack.c.b16 %v520, %v519
        %v533 = vpack.c.b16 %v522, %v521
        %v534 = vpack.c.b16 %v524, %v523
        %v535 = vpack.c.b16 %v526, %v525
        %v536 = vpack.c.b16 %v528, %v527
        %v545 = vunpack.c.l.b16 %v489
        %v546 = vunpack.c.l.b16 %v490
        %v547 = vunpack.c.l.b16 %v491
        %v548 = vunpack.c.l.b16 %v492
        %v549 = vunpack.c.l.b16 %v493
        %v550 = vunpack.c.l.b16 %v494
        %v551 = vunpack.c.l.b16 %v495
        %v552 = vunpack.c.l.b16 %v496
        %v553 = vpack.c.b16 %v546, %v545
        %v554 = vpack.c.b16 %v548, %v547
        %v555 = vpack.c.b16 %v550, %v549
        %v556 = vpack.c.b16 %v552, %v551
        %vm561 = vcmask 523264
        %v563 = vsel %vm561, %v529, 0
        %v566 = vsel %vm561, %v530, 0
        %v569 = vsel %vm561, %v531, 0
        %v572 = vsel %vm561, %v532, 0
        %v575 = vsel %vm561, %v533, 0
        %v578 = vsel %vm561, %v534, 0
        %v581 = vsel %vm561, %v535, 0
        %v584 = vsel %vm561, %v536, 0
        %586 = vmatpush.bf16.msra.mxu0 0
        %587 = vmatpush.bf16.msra.mxu0 0
        %588 = vmatpush.bf16.msra.mxu0 0
        %589 = vmatpush.bf16.msra.mxu0 0
        %590 = vmatpush.bf16.msra.mxu0 %v556
        %591 = vmatpush.bf16.msra.mxu0 %v555
        %592 = vmatpush.bf16.msra.mxu0 %v554
        %593 = vmatpush.bf16.msra.mxu0 %v553
        %594 = vmatmul.bf16.gmra.mxu0 %v563
        %v595 = vpop.f32.mrf.mxu0
        %v596 = vadd.f32 0.0, %v595
        %v597 = vpop.f32.mrf.mxu0
        %v598 = vadd.f32 0.0, %v597
        %599 = vmatmul.bf16.gmra.mxu0 %v566
        %v600 = vpop.f32.mrf.mxu0
        %v601 = vadd.f32 0.0, %v600
        %v602 = vpop.f32.mrf.mxu0
        %v603 = vadd.f32 0.0, %v602
        %604 = vmatmul.bf16.gmra.mxu0 %v569
        %v605 = vpop.f32.mrf.mxu0
        %v606 = vadd.f32 0.0, %v605
        %v607 = vpop.f32.mrf.mxu0
        %v608 = vadd.f32 0.0, %v607
        %609 = vmatmul.bf16.gmra.mxu0 %v572
        %v610 = vpop.f32.mrf.mxu0
        %v611 = vadd.f32 0.0, %v610
        %v612 = vpop.f32.mrf.mxu0
        %v613 = vadd.f32 0.0, %v612
        %614 = vmatmul.bf16.gmra.mxu0 %v575
        %v615 = vpop.f32.mrf.mxu0
        %v616 = vadd.f32 0.0, %v615
        %v617 = vpop.f32.mrf.mxu0
        %v618 = vadd.f32 0.0, %v617
        %619 = vmatmul.bf16.gmra.mxu0 %v578
        %v620 = vpop.f32.mrf.mxu0
        %v621 = vadd.f32 0.0, %v620
        %v622 = vpop.f32.mrf.mxu0
        %v623 = vadd.f32 0.0, %v622
        %624 = vmatmul.bf16.gmra.mxu0 %v581
        %v625 = vpop.f32.mrf.mxu0
        %v626 = vadd.f32 0.0, %v625
        %v627 = vpop.f32.mrf.mxu0
        %v628 = vadd.f32 0.0, %v627
        %629 = vmatmul.bf16.gmra.mxu0 %v584
        %v630 = vpop.f32.mrf.mxu0
        %v631 = vadd.f32 0.0, %v630
        %v632 = vpop.f32.mrf.mxu0
        %v633 = vadd.f32 0.0, %v632
        %634 = vdwg.mxu0
        %v635 = vld [vmem:[%s3] sm:$0x1]
        %v637 = vperm.slane %v635, 0
        %v639 = vmul.f32 %v596, %v637
        %v640 = vmul.f32 %v598, %v637
        %v641 = vmul.f32 %v601, %v637
        %v642 = vmul.f32 %v603, %v637
        %v643 = vmul.f32 %v606, %v637
        %v644 = vmul.f32 %v608, %v637
        %v645 = vmul.f32 %v611, %v637
        %v646 = vmul.f32 %v613, %v637
        %v647 = vmul.f32 %v616, %v637
        %v648 = vmul.f32 %v618, %v637
        %v649 = vmul.f32 %v621, %v637
        %v650 = vmul.f32 %v623, %v637
        %v651 = vmul.f32 %v626, %v637
        %v652 = vmul.f32 %v628, %v637
        %v653 = vmul.f32 %v631, %v637
        %v654 = vmul.f32 %v633, %v637
        %v655 = vld [vmem:[%s4] sm:$0x1]
        %v657 = vperm.slane %v655, 0
        %v659 = vadd.f32 %v639, %v657
        %v660 = vadd.f32 %v640, %v657
        %v661 = vadd.f32 %v641, %v657
        %v662 = vadd.f32 %v642, %v657
        %v663 = vadd.f32 %v643, %v657
        %v664 = vadd.f32 %v644, %v657
        %v665 = vadd.f32 %v645, %v657
        %v666 = vadd.f32 %v646, %v657
        %v667 = vadd.f32 %v647, %v657
        %v668 = vadd.f32 %v648, %v657
        %v669 = vadd.f32 %v649, %v657
        %v670 = vadd.f32 %v650, %v657
        %v671 = vadd.f32 %v651, %v657
        %v672 = vadd.f32 %v652, %v657
        %v673 = vadd.f32 %v653, %v657
        %v674 = vadd.f32 %v654, %v657
        %v675 = vmax.f32 %v659, 0.0
        %v676 = vmax.f32 %v660, 0.0
        %v677 = vmax.f32 %v661, 0.0
        %v678 = vmax.f32 %v662, 0.0
        %v679 = vmax.f32 %v663, 0.0
        %v680 = vmax.f32 %v664, 0.0
        %v681 = vmax.f32 %v665, 0.0
        %v682 = vmax.f32 %v666, 0.0
        %v683 = vmax.f32 %v667, 0.0
        %v684 = vmax.f32 %v668, 0.0
        %v685 = vmax.f32 %v669, 0.0
        %v686 = vmax.f32 %v670, 0.0
        %v687 = vmax.f32 %v671, 0.0
        %v688 = vmax.f32 %v672, 0.0
        %v689 = vmax.f32 %v673, 0.0
        %v690 = vmax.f32 %v674, 0.0
        %v691 = vrot.slane %v675, 7
        %v692 = vrot.slane %v676, 7
        %v693 = vrot.slane %v677, 7
        %v694 = vrot.slane %v678, 7
        %v695 = vrot.slane %v679, 7
        %v696 = vrot.slane %v680, 7
        %v697 = vrot.slane %v681, 7
        %v698 = vrot.slane %v682, 7
        %v699 = vrot.slane %v683, 7
        %v700 = vrot.slane %v684, 7
        %v701 = vrot.slane %v685, 7
        %v702 = vrot.slane %v686, 7
        %v703 = vrot.slane %v687, 7
        %v704 = vrot.slane %v688, 7
        %v705 = vrot.slane %v689, 7
        %v706 = vrot.slane %v690, 7
        %v707 = vlaneseq
        %v708 = vshrl.u32 %v707, 7
        %vm709 = vcmp.lt.s32.totalorder %v708, 1
        %v710 = vsel %vm709, %v705, %v706
        %v711 = vsel %vm709, %v704, %v705
        %v712 = vsel %vm709, %v703, %v704
        %v713 = vsel %vm709, %v702, %v703
        %v714 = vsel %vm709, %v701, %v702
        %v715 = vsel %vm709, %v700, %v701
        %v716 = vsel %vm709, %v699, %v700
        %v717 = vsel %vm709, %v698, %v699
        %v718 = vsel %vm709, %v697, %v698
        %v719 = vsel %vm709, %v696, %v697
        %v720 = vsel %vm709, %v695, %v696
        %v721 = vsel %vm709, %v694, %v695
        %v722 = vsel %vm709, %v693, %v694
        %v723 = vsel %vm709, %v692, %v693
        %v724 = vsel %vm709, %v691, %v692
        %v725 = vsel %vm709, %v706, %v691
        %v726 = vld [vmem:[%s1] sm:$0xff]
        %v727 = vld [vmem:[%s1 + $0x8] sm:$0xff]
        %v728 = vld [vmem:[%s1 + $0x10] sm:$0xff]
        %v729 = vld [vmem:[%s1 + $0x18] sm:$0xff]
        %v730 = vld [vmem:[%s1 + $0x20] sm:$0xff]
        %v731 = vld [vmem:[%s1 + $0x28] sm:$0xff]
        %v732 = vld [vmem:[%s1 + $0x30] sm:$0xff]
        %v733 = vld [vmem:[%s1 + $0x38] sm:$0xff]
        %v734 = vld [vmem:[%s1 + $0x40] sm:$0xff]
        %v735 = vld [vmem:[%s1 + $0x48] sm:$0xff]
        %v736 = vld [vmem:[%s1 + $0x50] sm:$0xff]
        %v737 = vld [vmem:[%s1 + $0x58] sm:$0xff]
        %v738 = vld [vmem:[%s1 + $0x60] sm:$0xff]
        %v739 = vld [vmem:[%s1 + $0x68] sm:$0xff]
        %v740 = vld [vmem:[%s1 + $0x70] sm:$0xff]
        %v741 = vld [vmem:[%s1 + $0x78] sm:$0xff]
        %743 = vset.pattern.permute.xlu0 0
        %744 = vperm.xlu0 %743, %v726
        %v745 = vpop.permute.xlu0 %744
        %748 = vset.pattern.permute.xlu0 0
        %749 = vperm.xlu0 %748, %v727
        %v750 = vpop.permute.xlu0 %749
        %753 = vset.pattern.permute.xlu0 0
        %754 = vperm.xlu0 %753, %v728
        %v755 = vpop.permute.xlu0 %754
        %758 = vset.pattern.permute.xlu0 0
        %759 = vperm.xlu0 %758, %v729
        %v760 = vpop.permute.xlu0 %759
        %763 = vset.pattern.permute.xlu0 0
        %764 = vperm.xlu0 %763, %v730
        %v765 = vpop.permute.xlu0 %764
        %768 = vset.pattern.permute.xlu0 0
        %769 = vperm.xlu0 %768, %v731
        %v770 = vpop.permute.xlu0 %769
        %773 = vset.pattern.permute.xlu0 0
        %774 = vperm.xlu0 %773, %v732
        %v775 = vpop.permute.xlu0 %774
        %778 = vset.pattern.permute.xlu0 0
        %779 = vperm.xlu0 %778, %v733
        %v780 = vpop.permute.xlu0 %779
        %783 = vset.pattern.permute.xlu0 0
        %784 = vperm.xlu0 %783, %v734
        %v785 = vpop.permute.xlu0 %784
        %788 = vset.pattern.permute.xlu0 0
        %789 = vperm.xlu0 %788, %v735
        %v790 = vpop.permute.xlu0 %789
        %793 = vset.pattern.permute.xlu0 0
        %794 = vperm.xlu0 %793, %v736
        %v795 = vpop.permute.xlu0 %794
        %798 = vset.pattern.permute.xlu0 0
        %799 = vperm.xlu0 %798, %v737
        %v800 = vpop.permute.xlu0 %799
        %803 = vset.pattern.permute.xlu0 0
        %804 = vperm.xlu0 %803, %v738
        %v805 = vpop.permute.xlu0 %804
        %808 = vset.pattern.permute.xlu0 0
        %809 = vperm.xlu0 %808, %v739
        %v810 = vpop.permute.xlu0 %809
        %813 = vset.pattern.permute.xlu0 0
        %814 = vperm.xlu0 %813, %v740
        %v815 = vpop.permute.xlu0 %814
        %818 = vset.pattern.permute.xlu0 0
        %819 = vperm.xlu0 %818, %v741
        %v820 = vpop.permute.xlu0 %819
        %v822 = vmul.f32 %v710, %v745
        %v823 = vmul.f32 %v725, %v750
        %v824 = vmul.f32 %v724, %v755
        %v825 = vmul.f32 %v723, %v760
        %v826 = vmul.f32 %v722, %v765
        %v827 = vmul.f32 %v721, %v770
        %v828 = vmul.f32 %v720, %v775
        %v829 = vmul.f32 %v719, %v780
        %v830 = vmul.f32 %v718, %v785
        %v831 = vmul.f32 %v717, %v790
        %v832 = vmul.f32 %v716, %v795
        %v833 = vmul.f32 %v715, %v800
        %v834 = vmul.f32 %v714, %v805
        %v835 = vmul.f32 %v713, %v810
        %v836 = vmul.f32 %v712, %v815
        %v837 = vmul.f32 %v711, %v820
        %v838 = vpack.c.bf16 %v823, %v822
        %v839 = vpack.c.bf16 %v825, %v824
        %v840 = vpack.c.bf16 %v827, %v826
        %v841 = vpack.c.bf16 %v829, %v828
        %v842 = vpack.c.bf16 %v831, %v830
        %v843 = vpack.c.bf16 %v833, %v832
        %v844 = vpack.c.bf16 %v835, %v834
        %v845 = vpack.c.bf16 %v837, %v836
        %v846 = vld [vmem:[%s5] sm:$0xf]
        %v847 = vld [vmem:[%s5 + $0x4] sm:$0xf]
        %v848 = vld [vmem:[%s5 + $0x8] sm:$0xf]
        %v849 = vld [vmem:[%s5 + $0xc] sm:$0xf]
        %s850 = scalar_lea.vmem %s1, 128
        %v851 = vld [vmem:[%s850] sm:$0xff]
        %v852 = vld [vmem:[%s850 + $0x8] sm:$0xff]
        %v853 = vld [vmem:[%s850 + $0x10] sm:$0xff]
        %v854 = vld [vmem:[%s850 + $0x18] sm:$0xff]
        %v855 = vld [vmem:[%s850 + $0x20] sm:$0xff]
        %v856 = vld [vmem:[%s850 + $0x28] sm:$0xff]
        %v857 = vld [vmem:[%s850 + $0x30] sm:$0xff]
        %v858 = vld [vmem:[%s850 + $0x38] sm:$0xff]
        %v859 = vld [vmem:[%s850 + $0x40] sm:$0xff]
        %v860 = vld [vmem:[%s850 + $0x48] sm:$0xff]
        %v861 = vld [vmem:[%s850 + $0x50] sm:$0xff]
        %v862 = vld [vmem:[%s850 + $0x58] sm:$0xff]
        %v863 = vld [vmem:[%s850 + $0x60] sm:$0xff]
        %v864 = vld [vmem:[%s850 + $0x68] sm:$0xff]
        %v865 = vld [vmem:[%s850 + $0x70] sm:$0xff]
        %v866 = vld [vmem:[%s850 + $0x78] sm:$0xff]
        %868 = vset.pattern.permute.xlu0 0
        %869 = vperm.xlu0 %868, %v851
        %v870 = vpop.permute.xlu0 %869
        %873 = vset.pattern.permute.xlu0 0
        %874 = vperm.xlu0 %873, %v852
        %v875 = vpop.permute.xlu0 %874
        %878 = vset.pattern.permute.xlu0 0
        %879 = vperm.xlu0 %878, %v853
        %v880 = vpop.permute.xlu0 %879
        %883 = vset.pattern.permute.xlu0 0
        %884 = vperm.xlu0 %883, %v854
        %v885 = vpop.permute.xlu0 %884
        %888 = vset.pattern.permute.xlu0 0
        %889 = vperm.xlu0 %888, %v855
        %v890 = vpop.permute.xlu0 %889
        %893 = vset.pattern.permute.xlu0 0
        %894 = vperm.xlu0 %893, %v856
        %v895 = vpop.permute.xlu0 %894
        %898 = vset.pattern.permute.xlu0 0
        %899 = vperm.xlu0 %898, %v857
        %v900 = vpop.permute.xlu0 %899
        %903 = vset.pattern.permute.xlu0 0
        %904 = vperm.xlu0 %903, %v858
        %v905 = vpop.permute.xlu0 %904
        %908 = vset.pattern.permute.xlu0 0
        %909 = vperm.xlu0 %908, %v859
        %v910 = vpop.permute.xlu0 %909
        %913 = vset.pattern.permute.xlu0 0
        %914 = vperm.xlu0 %913, %v860
        %v915 = vpop.permute.xlu0 %914
        %918 = vset.pattern.permute.xlu0 0
        %919 = vperm.xlu0 %918, %v861
        %v920 = vpop.permute.xlu0 %919
        %923 = vset.pattern.permute.xlu0 0
        %924 = vperm.xlu0 %923, %v862
        %v925 = vpop.permute.xlu0 %924
        %928 = vset.pattern.permute.xlu0 0
        %929 = vperm.xlu0 %928, %v863
        %v930 = vpop.permute.xlu0 %929
        %933 = vset.pattern.permute.xlu0 0
        %934 = vperm.xlu0 %933, %v864
        %v935 = vpop.permute.xlu0 %934
        %938 = vset.pattern.permute.xlu0 0
        %939 = vperm.xlu0 %938, %v865
        %v940 = vpop.permute.xlu0 %939
        %943 = vset.pattern.permute.xlu0 0
        %944 = vperm.xlu0 %943, %v866
        %v945 = vpop.permute.xlu0 %944
        %v947 = vmul.f32 %v690, %v870
        %v948 = vmul.f32 %v675, %v875
        %v949 = vmul.f32 %v676, %v880
        %v950 = vmul.f32 %v677, %v885
        %v951 = vmul.f32 %v678, %v890
        %v952 = vmul.f32 %v679, %v895
        %v953 = vmul.f32 %v680, %v900
        %v954 = vmul.f32 %v681, %v905
        %v955 = vmul.f32 %v682, %v910
        %v956 = vmul.f32 %v683, %v915
        %v957 = vmul.f32 %v684, %v920
        %v958 = vmul.f32 %v685, %v925
        %v959 = vmul.f32 %v686, %v930
        %v960 = vmul.f32 %v687, %v935
        %v961 = vmul.f32 %v688, %v940
        %v962 = vmul.f32 %v689, %v945
        %v963 = vpack.c.bf16 %v948, %v947
        %v964 = vpack.c.bf16 %v950, %v949
        %v965 = vpack.c.bf16 %v952, %v951
        %v966 = vpack.c.bf16 %v954, %v953
        %v967 = vpack.c.bf16 %v956, %v955
        %v968 = vpack.c.bf16 %v958, %v957
        %v969 = vpack.c.bf16 %v960, %v959
        %v970 = vpack.c.bf16 %v962, %v961
        %s971 = scalar_lea.vmem %s5, 16
        %v972 = vld [vmem:[%s971] sm:$0xf]
        %v973 = vld [vmem:[%s971 + $0x4] sm:$0xf]
        %v974 = vld [vmem:[%s971 + $0x8] sm:$0xf]
        %v975 = vld [vmem:[%s971 + $0xc] sm:$0xf]
        %v980 = vunpack.c.l.b16 %v972
        %v981 = vunpack.c.l.b16 %v973
        %v982 = vunpack.c.l.b16 %v974
        %v983 = vunpack.c.l.b16 %v975
        %v984 = vpack.c.b16 %v981, %v980
        %v985 = vpack.c.b16 %v983, %v982
        %vm988 = vcmask 261120
        %v990 = vsel %vm988, %v963, 0
        %v993 = vsel %vm988, %v964, 0
        %v996 = vsel %vm988, %v965, 0
        %v999 = vsel %vm988, %v966, 0
        %v1002 = vsel %vm988, %v967, 0
        %v1005 = vsel %vm988, %v968, 0
        %v1008 = vsel %vm988, %v969, 0
        %v1011 = vsel %vm988, %v970, 0
        %1013 = vmatpush.bf16.msra.mxu0 0
        %1014 = vmatpush.bf16.msra.mxu0 0
        %1015 = vmatpush.bf16.msra.mxu0 0
        %1016 = vmatpush.bf16.msra.mxu0 0
        %1017 = vmatpush.bf16.msra.mxu0 0
        %1018 = vmatpush.bf16.msra.mxu0 0
        %1019 = vmatpush.bf16.msra.mxu0 %v985
        %1020 = vmatpush.bf16.msra.mxu0 %v984
        %1021 = vmatmul.bf16.gmra.mxu0 %v990
        %v1022 = vpop.f32.mrf.mxu0
        %v1023 = vadd.f32 0.0, %v1022
        %v1024 = vpop.f32.mrf.mxu0
        %v1025 = vadd.f32 0.0, %v1024
        %1026 = vmatmul.bf16.gmra.mxu0 %v993
        %v1027 = vpop.f32.mrf.mxu0
        %v1028 = vadd.f32 0.0, %v1027
        %v1029 = vpop.f32.mrf.mxu0
        %v1030 = vadd.f32 0.0, %v1029
        %1031 = vmatmul.bf16.gmra.mxu0 %v996
        %v1032 = vpop.f32.mrf.mxu0
        %v1033 = vadd.f32 0.0, %v1032
        %v1034 = vpop.f32.mrf.mxu0
        %v1035 = vadd.f32 0.0, %v1034
        %1036 = vmatmul.bf16.gmra.mxu0 %v999
        %v1037 = vpop.f32.mrf.mxu0
        %v1038 = vadd.f32 0.0, %v1037
        %v1039 = vpop.f32.mrf.mxu0
        %v1040 = vadd.f32 0.0, %v1039
        %1041 = vmatmul.bf16.gmra.mxu0 %v1002
        %v1042 = vpop.f32.mrf.mxu0
        %v1043 = vadd.f32 0.0, %v1042
        %v1044 = vpop.f32.mrf.mxu0
        %v1045 = vadd.f32 0.0, %v1044
        %1046 = vmatmul.bf16.gmra.mxu0 %v1005
        %v1047 = vpop.f32.mrf.mxu0
        %v1048 = vadd.f32 0.0, %v1047
        %v1049 = vpop.f32.mrf.mxu0
        %v1050 = vadd.f32 0.0, %v1049
        %1051 = vmatmul.bf16.gmra.mxu0 %v1008
        %v1052 = vpop.f32.mrf.mxu0
        %v1053 = vadd.f32 0.0, %v1052
        %v1054 = vpop.f32.mrf.mxu0
        %v1055 = vadd.f32 0.0, %v1054
        %1056 = vmatmul.bf16.gmra.mxu0 %v1011
        %v1057 = vpop.f32.mrf.mxu0
        %v1058 = vadd.f32 0.0, %v1057
        %v1059 = vpop.f32.mrf.mxu0
        %v1060 = vadd.f32 0.0, %v1059
        %1061 = vdwg.mxu0
        %v1066 = vunpack.c.l.b16 %v846
        %v1067 = vunpack.c.l.b16 %v847
        %v1068 = vunpack.c.l.b16 %v848
        %v1069 = vunpack.c.l.b16 %v849
        %v1070 = vpack.c.b16 %v1067, %v1066
        %v1071 = vpack.c.b16 %v1069, %v1068
        %v1075 = vsel %vm988, %v838, 0
        %v1078 = vsel %vm988, %v839, 0
        %v1081 = vsel %vm988, %v840, 0
        %v1084 = vsel %vm988, %v841, 0
        %v1087 = vsel %vm988, %v842, 0
        %v1090 = vsel %vm988, %v843, 0
        %v1093 = vsel %vm988, %v844, 0
        %v1096 = vsel %vm988, %v845, 0
        %1098 = vmatpush.bf16.msra.mxu0 0
        %1099 = vmatpush.bf16.msra.mxu0 0
        %1100 = vmatpush.bf16.msra.mxu0 0
        %1101 = vmatpush.bf16.msra.mxu0 0
        %1102 = vmatpush.bf16.msra.mxu0 0
        %1103 = vmatpush.bf16.msra.mxu0 0
        %1104 = vmatpush.bf16.msra.mxu0 %v1071
        %1105 = vmatpush.bf16.msra.mxu0 %v1070
        %1106 = vmatmul.bf16.gmra.mxu0 %v1075
        %v1107 = vpop.f32.mrf.mxu0
        %v1108 = vadd.f32 %v1023, %v1107
        %v1109 = vpop.f32.mrf.mxu0
        %v1110 = vadd.f32 %v1025, %v1109
        %1111 = vmatmul.bf16.gmra.mxu0 %v1078
        %v1112 = vpop.f32.mrf.mxu0
        %v1113 = vadd.f32 %v1028, %v1112
        %v1114 = vpop.f32.mrf.mxu0
        %v1115 = vadd.f32 %v1030, %v1114
        %1116 = vmatmul.bf16.gmra.mxu0 %v1081
        %v1117 = vpop.f32.mrf.mxu0
        %v1118 = vadd.f32 %v1033, %v1117
        %v1119 = vpop.f32.mrf.mxu0
        %v1120 = vadd.f32 %v1035, %v1119
        %1121 = vmatmul.bf16.gmra.mxu0 %v1084
        %v1122 = vpop.f32.mrf.mxu0
        %v1123 = vadd.f32 %v1038, %v1122
        %v1124 = vpop.f32.mrf.mxu0
        %v1125 = vadd.f32 %v1040, %v1124
        %1126 = vmatmul.bf16.gmra.mxu0 %v1087
        %v1127 = vpop.f32.mrf.mxu0
        %v1128 = vadd.f32 %v1043, %v1127
        %v1129 = vpop.f32.mrf.mxu0
        %v1130 = vadd.f32 %v1045, %v1129
        %1131 = vmatmul.bf16.gmra.mxu0 %v1090
        %v1132 = vpop.f32.mrf.mxu0
        %v1133 = vadd.f32 %v1048, %v1132
        %v1134 = vpop.f32.mrf.mxu0
        %v1135 = vadd.f32 %v1050, %v1134
        %1136 = vmatmul.bf16.gmra.mxu0 %v1093
        %v1137 = vpop.f32.mrf.mxu0
        %v1138 = vadd.f32 %v1053, %v1137
        %v1139 = vpop.f32.mrf.mxu0
        %v1140 = vadd.f32 %v1055, %v1139
        %1141 = vmatmul.bf16.gmra.mxu0 %v1096
        %v1142 = vpop.f32.mrf.mxu0
        %v1143 = vadd.f32 %v1058, %v1142
        %v1144 = vpop.f32.mrf.mxu0
        %v1145 = vadd.f32 %v1060, %v1144
        %1146 = vdwg.mxu0
        %v1147 = vrot.slane %v675, 1
        %v1148 = vrot.slane %v676, 1
        %v1149 = vrot.slane %v677, 1
        %v1150 = vrot.slane %v678, 1
        %v1151 = vrot.slane %v679, 1
        %v1152 = vrot.slane %v680, 1
        %v1153 = vrot.slane %v681, 1
        %v1154 = vrot.slane %v682, 1
        %v1155 = vrot.slane %v683, 1
        %v1156 = vrot.slane %v684, 1
        %v1157 = vrot.slane %v685, 1
        %v1158 = vrot.slane %v686, 1
        %v1159 = vrot.slane %v687, 1
        %v1160 = vrot.slane %v688, 1
        %v1161 = vrot.slane %v689, 1
        %v1162 = vrot.slane %v690, 1
        %vm1163 = vcmp.lt.s32.totalorder %v708, 7
        %v1164 = vsel %vm1163, %v1161, %v1162
        %v1165 = vsel %vm1163, %v1160, %v1161
        %v1166 = vsel %vm1163, %v1159, %v1160
        %v1167 = vsel %vm1163, %v1158, %v1159
        %v1168 = vsel %vm1163, %v1157, %v1158
        %v1169 = vsel %vm1163, %v1156, %v1157
        %v1170 = vsel %vm1163, %v1155, %v1156
        %v1171 = vsel %vm1163, %v1154, %v1155
        %v1172 = vsel %vm1163, %v1153, %v1154
        %v1173 = vsel %vm1163, %v1152, %v1153
        %v1174 = vsel %vm1163, %v1151, %v1152
        %v1175 = vsel %vm1163, %v1150, %v1151
        %v1176 = vsel %vm1163, %v1149, %v1150
        %v1177 = vsel %vm1163, %v1148, %v1149
        %v1178 = vsel %vm1163, %v1147, %v1148
        %v1179 = vsel %vm1163, %v1162, %v1147
        %s1180 = scalar_lea.vmem %s1, 256
        %v1181 = vld [vmem:[%s1180] sm:$0xff]
        %v1182 = vld [vmem:[%s1180 + $0x8] sm:$0xff]
        %v1183 = vld [vmem:[%s1180 + $0x10] sm:$0xff]
        %v1184 = vld [vmem:[%s1180 + $0x18] sm:$0xff]
        %v1185 = vld [vmem:[%s1180 + $0x20] sm:$0xff]
        %v1186 = vld [vmem:[%s1180 + $0x28] sm:$0xff]
        %v1187 = vld [vmem:[%s1180 + $0x30] sm:$0xff]
        %v1188 = vld [vmem:[%s1180 + $0x38] sm:$0xff]
        %v1189 = vld [vmem:[%s1180 + $0x40] sm:$0xff]
        %v1190 = vld [vmem:[%s1180 + $0x48] sm:$0xff]
        %v1191 = vld [vmem:[%s1180 + $0x50] sm:$0xff]
        %v1192 = vld [vmem:[%s1180 + $0x58] sm:$0xff]
        %v1193 = vld [vmem:[%s1180 + $0x60] sm:$0xff]
        %v1194 = vld [vmem:[%s1180 + $0x68] sm:$0xff]
        %v1195 = vld [vmem:[%s1180 + $0x70] sm:$0xff]
        %v1196 = vld [vmem:[%s1180 + $0x78] sm:$0xff]
        %1198 = vset.pattern.permute.xlu0 0
        %1199 = vperm.xlu0 %1198, %v1181
        %v1200 = vpop.permute.xlu0 %1199
        %1203 = vset.pattern.permute.xlu0 0
        %1204 = vperm.xlu0 %1203, %v1182
        %v1205 = vpop.permute.xlu0 %1204
        %1208 = vset.pattern.permute.xlu0 0
        %1209 = vperm.xlu0 %1208, %v1183
        %v1210 = vpop.permute.xlu0 %1209
        %1213 = vset.pattern.permute.xlu0 0
        %1214 = vperm.xlu0 %1213, %v1184
        %v1215 = vpop.permute.xlu0 %1214
        %1218 = vset.pattern.permute.xlu0 0
        %1219 = vperm.xlu0 %1218, %v1185
        %v1220 = vpop.permute.xlu0 %1219
        %1223 = vset.pattern.permute.xlu0 0
        %1224 = vperm.xlu0 %1223, %v1186
        %v1225 = vpop.permute.xlu0 %1224
        %1228 = vset.pattern.permute.xlu0 0
        %1229 = vperm.xlu0 %1228, %v1187
        %v1230 = vpop.permute.xlu0 %1229
        %1233 = vset.pattern.permute.xlu0 0
        %1234 = vperm.xlu0 %1233, %v1188
        %v1235 = vpop.permute.xlu0 %1234
        %1238 = vset.pattern.permute.xlu0 0
        %1239 = vperm.xlu0 %1238, %v1189
        %v1240 = vpop.permute.xlu0 %1239
        %1243 = vset.pattern.permute.xlu0 0
        %1244 = vperm.xlu0 %1243, %v1190
        %v1245 = vpop.permute.xlu0 %1244
        %1248 = vset.pattern.permute.xlu0 0
        %1249 = vperm.xlu0 %1248, %v1191
        %v1250 = vpop.permute.xlu0 %1249
        %1253 = vset.pattern.permute.xlu0 0
        %1254 = vperm.xlu0 %1253, %v1192
        %v1255 = vpop.permute.xlu0 %1254
        %1258 = vset.pattern.permute.xlu0 0
        %1259 = vperm.xlu0 %1258, %v1193
        %v1260 = vpop.permute.xlu0 %1259
        %1263 = vset.pattern.permute.xlu0 0
        %1264 = vperm.xlu0 %1263, %v1194
        %v1265 = vpop.permute.xlu0 %1264
        %1268 = vset.pattern.permute.xlu0 0
        %1269 = vperm.xlu0 %1268, %v1195
        %v1270 = vpop.permute.xlu0 %1269
        %1273 = vset.pattern.permute.xlu0 0
        %1274 = vperm.xlu0 %1273, %v1196
        %v1275 = vpop.permute.xlu0 %1274
        %v1277 = vmul.f32 %v1179, %v1200
        %v1278 = vmul.f32 %v1178, %v1205
        %v1279 = vmul.f32 %v1177, %v1210
        %v1280 = vmul.f32 %v1176, %v1215
        %v1281 = vmul.f32 %v1175, %v1220
        %v1282 = vmul.f32 %v1174, %v1225
        %v1283 = vmul.f32 %v1173, %v1230
        %v1284 = vmul.f32 %v1172, %v1235
        %v1285 = vmul.f32 %v1171, %v1240
        %v1286 = vmul.f32 %v1170, %v1245
        %v1287 = vmul.f32 %v1169, %v1250
        %v1288 = vmul.f32 %v1168, %v1255
        %v1289 = vmul.f32 %v1167, %v1260
        %v1290 = vmul.f32 %v1166, %v1265
        %v1291 = vmul.f32 %v1165, %v1270
        %v1292 = vmul.f32 %v1164, %v1275
        %v1293 = vpack.c.bf16 %v1278, %v1277
        %v1294 = vpack.c.bf16 %v1280, %v1279
        %v1295 = vpack.c.bf16 %v1282, %v1281
        %v1296 = vpack.c.bf16 %v1284, %v1283
        %v1297 = vpack.c.bf16 %v1286, %v1285
        %v1298 = vpack.c.bf16 %v1288, %v1287
        %v1299 = vpack.c.bf16 %v1290, %v1289
        %v1300 = vpack.c.bf16 %v1292, %v1291
        %s1301 = scalar_lea.vmem %s5, 32
        %v1302 = vld [vmem:[%s1301] sm:$0xf]
        %v1303 = vld [vmem:[%s1301 + $0x4] sm:$0xf]
        %v1304 = vld [vmem:[%s1301 + $0x8] sm:$0xf]
        %v1305 = vld [vmem:[%s1301 + $0xc] sm:$0xf]
        %v1310 = vunpack.c.l.b16 %v1302
        %v1311 = vunpack.c.l.b16 %v1303
        %v1312 = vunpack.c.l.b16 %v1304
        %v1313 = vunpack.c.l.b16 %v1305
        %v1314 = vpack.c.b16 %v1311, %v1310
        %v1315 = vpack.c.b16 %v1313, %v1312
        %v1319 = vsel %vm988, %v1293, 0
        %v1322 = vsel %vm988, %v1294, 0
        %v1325 = vsel %vm988, %v1295, 0
        %v1328 = vsel %vm988, %v1296, 0
        %v1331 = vsel %vm988, %v1297, 0
        %v1334 = vsel %vm988, %v1298, 0
        %v1337 = vsel %vm988, %v1299, 0
        %v1340 = vsel %vm988, %v1300, 0
        %1342 = vmatpush.bf16.msra.mxu0 0
        %1343 = vmatpush.bf16.msra.mxu0 0
        %1344 = vmatpush.bf16.msra.mxu0 0
        %1345 = vmatpush.bf16.msra.mxu0 0
        %1346 = vmatpush.bf16.msra.mxu0 0
        %1347 = vmatpush.bf16.msra.mxu0 0
        %1348 = vmatpush.bf16.msra.mxu0 %v1315
        %1349 = vmatpush.bf16.msra.mxu0 %v1314
        %1350 = vmatmul.bf16.gmra.mxu0 %v1319
        %v1351 = vpop.f32.mrf.mxu0
        %v1352 = vadd.f32 0.0, %v1351
        %v1353 = vpop.f32.mrf.mxu0
        %v1354 = vadd.f32 0.0, %v1353
        %1355 = vmatmul.bf16.gmra.mxu0 %v1322
        %v1356 = vpop.f32.mrf.mxu0
        %v1357 = vadd.f32 0.0, %v1356
        %v1358 = vpop.f32.mrf.mxu0
        %v1359 = vadd.f32 0.0, %v1358
        %1360 = vmatmul.bf16.gmra.mxu0 %v1325
        %v1361 = vpop.f32.mrf.mxu0
        %v1362 = vadd.f32 0.0, %v1361
        %v1363 = vpop.f32.mrf.mxu0
        %v1364 = vadd.f32 0.0, %v1363
        %1365 = vmatmul.bf16.gmra.mxu0 %v1328
        %v1366 = vpop.f32.mrf.mxu0
        %v1367 = vadd.f32 0.0, %v1366
        %v1368 = vpop.f32.mrf.mxu0
        %v1369 = vadd.f32 0.0, %v1368
        %1370 = vmatmul.bf16.gmra.mxu0 %v1331
        %v1371 = vpop.f32.mrf.mxu0
        %v1372 = vadd.f32 0.0, %v1371
        %v1373 = vpop.f32.mrf.mxu0
        %v1374 = vadd.f32 0.0, %v1373
        %1375 = vmatmul.bf16.gmra.mxu0 %v1334
        %v1376 = vpop.f32.mrf.mxu0
        %v1377 = vadd.f32 0.0, %v1376
        %v1378 = vpop.f32.mrf.mxu0
        %v1379 = vadd.f32 0.0, %v1378
        %1380 = vmatmul.bf16.gmra.mxu0 %v1337
        %v1381 = vpop.f32.mrf.mxu0
        %v1382 = vadd.f32 0.0, %v1381
        %v1383 = vpop.f32.mrf.mxu0
        %v1384 = vadd.f32 0.0, %v1383
        %1385 = vmatmul.bf16.gmra.mxu0 %v1340
        %v1386 = vpop.f32.mrf.mxu0
        %v1387 = vadd.f32 0.0, %v1386
        %v1388 = vpop.f32.mrf.mxu0
        %v1389 = vadd.f32 0.0, %v1388
        %1390 = vdwg.mxu0
        %v1391 = vadd.f32 %v1108, %v1352
        %v1392 = vadd.f32 %v1110, %v1354
        %v1393 = vadd.f32 %v1113, %v1357
        %v1394 = vadd.f32 %v1115, %v1359
        %v1395 = vadd.f32 %v1118, %v1362
        %v1396 = vadd.f32 %v1120, %v1364
        %v1397 = vadd.f32 %v1123, %v1367
        %v1398 = vadd.f32 %v1125, %v1369
        %v1399 = vadd.f32 %v1128, %v1372
        %v1400 = vadd.f32 %v1130, %v1374
        %v1401 = vadd.f32 %v1133, %v1377
        %v1402 = vadd.f32 %v1135, %v1379
        %v1403 = vadd.f32 %v1138, %v1382
        %v1404 = vadd.f32 %v1140, %v1384
        %v1405 = vadd.f32 %v1143, %v1387
        %v1406 = vadd.f32 %v1145, %v1389
        %s1407 = scalar_lea.vmem %s1, 384
        %v1408 = vld [vmem:[%s1407] sm:$0xff]
        %v1409 = vld [vmem:[%s1407 + $0x8] sm:$0xff]
        %v1410 = vld [vmem:[%s1407 + $0x10] sm:$0xff]
        %v1411 = vld [vmem:[%s1407 + $0x18] sm:$0xff]
        %v1412 = vld [vmem:[%s1407 + $0x20] sm:$0xff]
        %v1413 = vld [vmem:[%s1407 + $0x28] sm:$0xff]
        %v1414 = vld [vmem:[%s1407 + $0x30] sm:$0xff]
        %v1415 = vld [vmem:[%s1407 + $0x38] sm:$0xff]
        %v1416 = vld [vmem:[%s1407 + $0x40] sm:$0xff]
        %v1417 = vld [vmem:[%s1407 + $0x48] sm:$0xff]
        %v1418 = vld [vmem:[%s1407 + $0x50] sm:$0xff]
        %v1419 = vld [vmem:[%s1407 + $0x58] sm:$0xff]
        %v1420 = vld [vmem:[%s1407 + $0x60] sm:$0xff]
        %v1421 = vld [vmem:[%s1407 + $0x68] sm:$0xff]
        %v1422 = vld [vmem:[%s1407 + $0x70] sm:$0xff]
        %v1423 = vld [vmem:[%s1407 + $0x78] sm:$0xff]
        %1425 = vset.pattern.permute.xlu0 0
        %1426 = vperm.xlu0 %1425, %v1408
        %v1427 = vpop.permute.xlu0 %1426
        %1430 = vset.pattern.permute.xlu0 0
        %1431 = vperm.xlu0 %1430, %v1409
        %v1432 = vpop.permute.xlu0 %1431
        %1435 = vset.pattern.permute.xlu0 0
        %1436 = vperm.xlu0 %1435, %v1410
        %v1437 = vpop.permute.xlu0 %1436
        %1440 = vset.pattern.permute.xlu0 0
        %1441 = vperm.xlu0 %1440, %v1411
        %v1442 = vpop.permute.xlu0 %1441
        %1445 = vset.pattern.permute.xlu0 0
        %1446 = vperm.xlu0 %1445, %v1412
        %v1447 = vpop.permute.xlu0 %1446
        %1450 = vset.pattern.permute.xlu0 0
        %1451 = vperm.xlu0 %1450, %v1413
        %v1452 = vpop.permute.xlu0 %1451
        %1455 = vset.pattern.permute.xlu0 0
        %1456 = vperm.xlu0 %1455, %v1414
        %v1457 = vpop.permute.xlu0 %1456
        %1460 = vset.pattern.permute.xlu0 0
        %1461 = vperm.xlu0 %1460, %v1415
        %v1462 = vpop.permute.xlu0 %1461
        %1465 = vset.pattern.permute.xlu0 0
        %1466 = vperm.xlu0 %1465, %v1416
        %v1467 = vpop.permute.xlu0 %1466
        %1470 = vset.pattern.permute.xlu0 0
        %1471 = vperm.xlu0 %1470, %v1417
        %v1472 = vpop.permute.xlu0 %1471
        %1475 = vset.pattern.permute.xlu0 0
        %1476 = vperm.xlu0 %1475, %v1418
        %v1477 = vpop.permute.xlu0 %1476
        %1480 = vset.pattern.permute.xlu0 0
        %1481 = vperm.xlu0 %1480, %v1419
        %v1482 = vpop.permute.xlu0 %1481
        %1485 = vset.pattern.permute.xlu0 0
        %1486 = vperm.xlu0 %1485, %v1420
        %v1487 = vpop.permute.xlu0 %1486
        %1490 = vset.pattern.permute.xlu0 0
        %1491 = vperm.xlu0 %1490, %v1421
        %v1492 = vpop.permute.xlu0 %1491
        %1495 = vset.pattern.permute.xlu0 0
        %1496 = vperm.xlu0 %1495, %v1422
        %v1497 = vpop.permute.xlu0 %1496
        %1500 = vset.pattern.permute.xlu0 0
        %1501 = vperm.xlu0 %1500, %v1423
        %v1502 = vpop.permute.xlu0 %1501
        %v1504 = vmul.f32 %v725, %v1427
        %v1505 = vmul.f32 %v724, %v1432
        %v1506 = vmul.f32 %v723, %v1437
        %v1507 = vmul.f32 %v722, %v1442
        %v1508 = vmul.f32 %v721, %v1447
        %v1509 = vmul.f32 %v720, %v1452
        %v1510 = vmul.f32 %v719, %v1457
        %v1511 = vmul.f32 %v718, %v1462
        %v1512 = vmul.f32 %v717, %v1467
        %v1513 = vmul.f32 %v716, %v1472
        %v1514 = vmul.f32 %v715, %v1477
        %v1515 = vmul.f32 %v714, %v1482
        %v1516 = vmul.f32 %v713, %v1487
        %v1517 = vmul.f32 %v712, %v1492
        %v1518 = vmul.f32 %v711, %v1497
        %v1519 = vmul.f32 %v710, %v1502
        %v1520 = vpack.c.bf16 %v1505, %v1504
        %v1521 = vpack.c.bf16 %v1507, %v1506
        %v1522 = vpack.c.bf16 %v1509, %v1508
        %v1523 = vpack.c.bf16 %v1511, %v1510
        %v1524 = vpack.c.bf16 %v1513, %v1512
        %v1525 = vpack.c.bf16 %v1515, %v1514
        %v1526 = vpack.c.bf16 %v1517, %v1516
        %v1527 = vpack.c.bf16 %v1519, %v1518
        %s1528 = scalar_lea.vmem %s5, 48
        %v1529 = vld [vmem:[%s1528] sm:$0xf]
        %v1530 = vld [vmem:[%s1528 + $0x4] sm:$0xf]
        %v1531 = vld [vmem:[%s1528 + $0x8] sm:$0xf]
        %v1532 = vld [vmem:[%s1528 + $0xc] sm:$0xf]
        %v1537 = vunpack.c.l.b16 %v1529
        %v1538 = vunpack.c.l.b16 %v1530
        %v1539 = vunpack.c.l.b16 %v1531
        %v1540 = vunpack.c.l.b16 %v1532
        %v1541 = vpack.c.b16 %v1538, %v1537
        %v1542 = vpack.c.b16 %v1540, %v1539
        %v1546 = vsel %vm988, %v1520, 0
        %v1549 = vsel %vm988, %v1521, 0
        %v1552 = vsel %vm988, %v1522, 0
        %v1555 = vsel %vm988, %v1523, 0
        %v1558 = vsel %vm988, %v1524, 0
        %v1561 = vsel %vm988, %v1525, 0
        %v1564 = vsel %vm988, %v1526, 0
        %v1567 = vsel %vm988, %v1527, 0
        %1569 = vmatpush.bf16.msra.mxu0 0
        %1570 = vmatpush.bf16.msra.mxu0 0
        %1571 = vmatpush.bf16.msra.mxu0 0
        %1572 = vmatpush.bf16.msra.mxu0 0
        %1573 = vmatpush.bf16.msra.mxu0 0
        %1574 = vmatpush.bf16.msra.mxu0 0
        %1575 = vmatpush.bf16.msra.mxu0 %v1542
        %1576 = vmatpush.bf16.msra.mxu0 %v1541
        %1577 = vmatmul.bf16.gmra.mxu0 %v1546
        %v1578 = vpop.f32.mrf.mxu0
        %v1579 = vadd.f32 0.0, %v1578
        %v1580 = vpop.f32.mrf.mxu0
        %v1581 = vadd.f32 0.0, %v1580
        %1582 = vmatmul.bf16.gmra.mxu0 %v1549
        %v1583 = vpop.f32.mrf.mxu0
        %v1584 = vadd.f32 0.0, %v1583
        %v1585 = vpop.f32.mrf.mxu0
        %v1586 = vadd.f32 0.0, %v1585
        %1587 = vmatmul.bf16.gmra.mxu0 %v1552
        %v1588 = vpop.f32.mrf.mxu0
        %v1589 = vadd.f32 0.0, %v1588
        %v1590 = vpop.f32.mrf.mxu0
        %v1591 = vadd.f32 0.0, %v1590
        %1592 = vmatmul.bf16.gmra.mxu0 %v1555
        %v1593 = vpop.f32.mrf.mxu0
        %v1594 = vadd.f32 0.0, %v1593
        %v1595 = vpop.f32.mrf.mxu0
        %v1596 = vadd.f32 0.0, %v1595
        %1597 = vmatmul.bf16.gmra.mxu0 %v1558
        %v1598 = vpop.f32.mrf.mxu0
        %v1599 = vadd.f32 0.0, %v1598
        %v1600 = vpop.f32.mrf.mxu0
        %v1601 = vadd.f32 0.0, %v1600
        %1602 = vmatmul.bf16.gmra.mxu0 %v1561
        %v1603 = vpop.f32.mrf.mxu0
        %v1604 = vadd.f32 0.0, %v1603
        %v1605 = vpop.f32.mrf.mxu0
        %v1606 = vadd.f32 0.0, %v1605
        %1607 = vmatmul.bf16.gmra.mxu0 %v1564
        %v1608 = vpop.f32.mrf.mxu0
        %v1609 = vadd.f32 0.0, %v1608
        %v1610 = vpop.f32.mrf.mxu0
        %v1611 = vadd.f32 0.0, %v1610
        %1612 = vmatmul.bf16.gmra.mxu0 %v1567
        %v1613 = vpop.f32.mrf.mxu0
        %v1614 = vadd.f32 0.0, %v1613
        %v1615 = vpop.f32.mrf.mxu0
        %v1616 = vadd.f32 0.0, %v1615
        %1617 = vdwg.mxu0
        %v1618 = vadd.f32 %v1391, %v1579
        %v1619 = vadd.f32 %v1392, %v1581
        %v1620 = vadd.f32 %v1393, %v1584
        %v1621 = vadd.f32 %v1394, %v1586
        %v1622 = vadd.f32 %v1395, %v1589
        %v1623 = vadd.f32 %v1396, %v1591
        %v1624 = vadd.f32 %v1397, %v1594
        %v1625 = vadd.f32 %v1398, %v1596
        %v1626 = vadd.f32 %v1399, %v1599
        %v1627 = vadd.f32 %v1400, %v1601
        %v1628 = vadd.f32 %v1401, %v1604
        %v1629 = vadd.f32 %v1402, %v1606
        %v1630 = vadd.f32 %v1403, %v1609
        %v1631 = vadd.f32 %v1404, %v1611
        %v1632 = vadd.f32 %v1405, %v1614
        %v1633 = vadd.f32 %v1406, %v1616
        %v1634 = vpack.c.bf16 %v676, %v675
        %v1635 = vpack.c.bf16 %v678, %v677
        %v1636 = vpack.c.bf16 %v680, %v679
        %v1637 = vpack.c.bf16 %v682, %v681
        %v1638 = vpack.c.bf16 %v684, %v683
        %v1639 = vpack.c.bf16 %v686, %v685
        %v1640 = vpack.c.bf16 %v688, %v687
        %v1641 = vpack.c.bf16 %v690, %v689
        %s1642 = scalar_lea.vmem %s5, 64
        %v1643 = vld [vmem:[%s1642] sm:$0xf]
        %v1644 = vld [vmem:[%s1642 + $0x4] sm:$0xf]
        %v1645 = vld [vmem:[%s1642 + $0x8] sm:$0xf]
        %v1646 = vld [vmem:[%s1642 + $0xc] sm:$0xf]
        %v1651 = vunpack.c.l.b16 %v1643
        %v1652 = vunpack.c.l.b16 %v1644
        %v1653 = vunpack.c.l.b16 %v1645
        %v1654 = vunpack.c.l.b16 %v1646
        %v1655 = vpack.c.b16 %v1652, %v1651
        %v1656 = vpack.c.b16 %v1654, %v1653
        %v1660 = vsel %vm988, %v1634, 0
        %v1663 = vsel %vm988, %v1635, 0
        %v1666 = vsel %vm988, %v1636, 0
        %v1669 = vsel %vm988, %v1637, 0
        %v1672 = vsel %vm988, %v1638, 0
        %v1675 = vsel %vm988, %v1639, 0
        %v1678 = vsel %vm988, %v1640, 0
        %v1681 = vsel %vm988, %v1641, 0
        %1683 = vmatpush.bf16.msra.mxu0 0
        %1684 = vmatpush.bf16.msra.mxu0 0
        %1685 = vmatpush.bf16.msra.mxu0 0
        %1686 = vmatpush.bf16.msra.mxu0 0
        %1687 = vmatpush.bf16.msra.mxu0 0
        %1688 = vmatpush.bf16.msra.mxu0 0
        %1689 = vmatpush.bf16.msra.mxu0 %v1656
        %1690 = vmatpush.bf16.msra.mxu0 %v1655
        %1691 = vmatmul.bf16.gmra.mxu0 %v1660
        %v1692 = vpop.f32.mrf.mxu0
        %v1693 = vadd.f32 0.0, %v1692
        %v1694 = vpop.f32.mrf.mxu0
        %v1695 = vadd.f32 0.0, %v1694
        %1696 = vmatmul.bf16.gmra.mxu0 %v1663
        %v1697 = vpop.f32.mrf.mxu0
        %v1698 = vadd.f32 0.0, %v1697
        %v1699 = vpop.f32.mrf.mxu0
        %v1700 = vadd.f32 0.0, %v1699
        %1701 = vmatmul.bf16.gmra.mxu0 %v1666
        %v1702 = vpop.f32.mrf.mxu0
        %v1703 = vadd.f32 0.0, %v1702
        %v1704 = vpop.f32.mrf.mxu0
        %v1705 = vadd.f32 0.0, %v1704
        %1706 = vmatmul.bf16.gmra.mxu0 %v1669
        %v1707 = vpop.f32.mrf.mxu0
        %v1708 = vadd.f32 0.0, %v1707
        %v1709 = vpop.f32.mrf.mxu0
        %v1710 = vadd.f32 0.0, %v1709
        %1711 = vmatmul.bf16.gmra.mxu0 %v1672
        %v1712 = vpop.f32.mrf.mxu0
        %v1713 = vadd.f32 0.0, %v1712
        %v1714 = vpop.f32.mrf.mxu0
        %v1715 = vadd.f32 0.0, %v1714
        %1716 = vmatmul.bf16.gmra.mxu0 %v1675
        %v1717 = vpop.f32.mrf.mxu0
        %v1718 = vadd.f32 0.0, %v1717
        %v1719 = vpop.f32.mrf.mxu0
        %v1720 = vadd.f32 0.0, %v1719
        %1721 = vmatmul.bf16.gmra.mxu0 %v1678
        %v1722 = vpop.f32.mrf.mxu0
        %v1723 = vadd.f32 0.0, %v1722
        %v1724 = vpop.f32.mrf.mxu0
        %v1725 = vadd.f32 0.0, %v1724
        %1726 = vmatmul.bf16.gmra.mxu0 %v1681
        %v1727 = vpop.f32.mrf.mxu0
        %v1728 = vadd.f32 0.0, %v1727
        %v1729 = vpop.f32.mrf.mxu0
        %v1730 = vadd.f32 0.0, %v1729
        %1731 = vdwg.mxu0
        %v1732 = vadd.f32 %v1618, %v1693
        %v1733 = vadd.f32 %v1619, %v1695
        %v1734 = vadd.f32 %v1620, %v1698
        %v1735 = vadd.f32 %v1621, %v1700
        %v1736 = vadd.f32 %v1622, %v1703
        %v1737 = vadd.f32 %v1623, %v1705
        %v1738 = vadd.f32 %v1624, %v1708
        %v1739 = vadd.f32 %v1625, %v1710
        %v1740 = vadd.f32 %v1626, %v1713
        %v1741 = vadd.f32 %v1627, %v1715
        %v1742 = vadd.f32 %v1628, %v1718
        %v1743 = vadd.f32 %v1629, %v1720
        %v1744 = vadd.f32 %v1630, %v1723
        %v1745 = vadd.f32 %v1631, %v1725
        %v1746 = vadd.f32 %v1632, %v1728
        %v1747 = vadd.f32 %v1633, %v1730
        %s1748 = scalar_lea.vmem %s1, 640
        %v1749 = vld [vmem:[%s1748] sm:$0xff]
        %v1750 = vld [vmem:[%s1748 + $0x8] sm:$0xff]
        %v1751 = vld [vmem:[%s1748 + $0x10] sm:$0xff]
        %v1752 = vld [vmem:[%s1748 + $0x18] sm:$0xff]
        %v1753 = vld [vmem:[%s1748 + $0x20] sm:$0xff]
        %v1754 = vld [vmem:[%s1748 + $0x28] sm:$0xff]
        %v1755 = vld [vmem:[%s1748 + $0x30] sm:$0xff]
        %v1756 = vld [vmem:[%s1748 + $0x38] sm:$0xff]
        %v1757 = vld [vmem:[%s1748 + $0x40] sm:$0xff]
        %v1758 = vld [vmem:[%s1748 + $0x48] sm:$0xff]
        %v1759 = vld [vmem:[%s1748 + $0x50] sm:$0xff]
        %v1760 = vld [vmem:[%s1748 + $0x58] sm:$0xff]
        %v1761 = vld [vmem:[%s1748 + $0x60] sm:$0xff]
        %v1762 = vld [vmem:[%s1748 + $0x68] sm:$0xff]
        %v1763 = vld [vmem:[%s1748 + $0x70] sm:$0xff]
        %v1764 = vld [vmem:[%s1748 + $0x78] sm:$0xff]
        %1766 = vset.pattern.permute.xlu0 0
        %1767 = vperm.xlu0 %1766, %v1749
        %v1768 = vpop.permute.xlu0 %1767
        %1771 = vset.pattern.permute.xlu0 0
        %1772 = vperm.xlu0 %1771, %v1750
        %v1773 = vpop.permute.xlu0 %1772
        %1776 = vset.pattern.permute.xlu0 0
        %1777 = vperm.xlu0 %1776, %v1751
        %v1778 = vpop.permute.xlu0 %1777
        %1781 = vset.pattern.permute.xlu0 0
        %1782 = vperm.xlu0 %1781, %v1752
        %v1783 = vpop.permute.xlu0 %1782
        %1786 = vset.pattern.permute.xlu0 0
        %1787 = vperm.xlu0 %1786, %v1753
        %v1788 = vpop.permute.xlu0 %1787
        %1791 = vset.pattern.permute.xlu0 0
        %1792 = vperm.xlu0 %1791, %v1754
        %v1793 = vpop.permute.xlu0 %1792
        %1796 = vset.pattern.permute.xlu0 0
        %1797 = vperm.xlu0 %1796, %v1755
        %v1798 = vpop.permute.xlu0 %1797
        %1801 = vset.pattern.permute.xlu0 0
        %1802 = vperm.xlu0 %1801, %v1756
        %v1803 = vpop.permute.xlu0 %1802
        %1806 = vset.pattern.permute.xlu0 0
        %1807 = vperm.xlu0 %1806, %v1757
        %v1808 = vpop.permute.xlu0 %1807
        %1811 = vset.pattern.permute.xlu0 0
        %1812 = vperm.xlu0 %1811, %v1758
        %v1813 = vpop.permute.xlu0 %1812
        %1816 = vset.pattern.permute.xlu0 0
        %1817 = vperm.xlu0 %1816, %v1759
        %v1818 = vpop.permute.xlu0 %1817
        %1821 = vset.pattern.permute.xlu0 0
        %1822 = vperm.xlu0 %1821, %v1760
        %v1823 = vpop.permute.xlu0 %1822
        %1826 = vset.pattern.permute.xlu0 0
        %1827 = vperm.xlu0 %1826, %v1761
        %v1828 = vpop.permute.xlu0 %1827
        %1831 = vset.pattern.permute.xlu0 0
        %1832 = vperm.xlu0 %1831, %v1762
        %v1833 = vpop.permute.xlu0 %1832
        %1836 = vset.pattern.permute.xlu0 0
        %1837 = vperm.xlu0 %1836, %v1763
        %v1838 = vpop.permute.xlu0 %1837
        %1841 = vset.pattern.permute.xlu0 0
        %1842 = vperm.xlu0 %1841, %v1764
        %v1843 = vpop.permute.xlu0 %1842
        %v1845 = vmul.f32 %v1178, %v1768
        %v1846 = vmul.f32 %v1177, %v1773
        %v1847 = vmul.f32 %v1176, %v1778
        %v1848 = vmul.f32 %v1175, %v1783
        %v1849 = vmul.f32 %v1174, %v1788
        %v1850 = vmul.f32 %v1173, %v1793
        %v1851 = vmul.f32 %v1172, %v1798
        %v1852 = vmul.f32 %v1171, %v1803
        %v1853 = vmul.f32 %v1170, %v1808
        %v1854 = vmul.f32 %v1169, %v1813
        %v1855 = vmul.f32 %v1168, %v1818
        %v1856 = vmul.f32 %v1167, %v1823
        %v1857 = vmul.f32 %v1166, %v1828
        %v1858 = vmul.f32 %v1165, %v1833
        %v1859 = vmul.f32 %v1164, %v1838
        %v1860 = vmul.f32 %v1179, %v1843
        %v1861 = vpack.c.bf16 %v1846, %v1845
        %v1862 = vpack.c.bf16 %v1848, %v1847
        %v1863 = vpack.c.bf16 %v1850, %v1849
        %v1864 = vpack.c.bf16 %v1852, %v1851
        %v1865 = vpack.c.bf16 %v1854, %v1853
        %v1866 = vpack.c.bf16 %v1856, %v1855
        %v1867 = vpack.c.bf16 %v1858, %v1857
        %v1868 = vpack.c.bf16 %v1860, %v1859
        %s1869 = scalar_lea.vmem %s5, 80
        %v1870 = vld [vmem:[%s1869] sm:$0xf]
        %v1871 = vld [vmem:[%s1869 + $0x4] sm:$0xf]
        %v1872 = vld [vmem:[%s1869 + $0x8] sm:$0xf]
        %v1873 = vld [vmem:[%s1869 + $0xc] sm:$0xf]
        %v1878 = vunpack.c.l.b16 %v1870
        %v1879 = vunpack.c.l.b16 %v1871
        %v1880 = vunpack.c.l.b16 %v1872
        %v1881 = vunpack.c.l.b16 %v1873
        %v1882 = vpack.c.b16 %v1879, %v1878
        %v1883 = vpack.c.b16 %v1881, %v1880
        %v1887 = vsel %vm988, %v1861, 0
        %v1890 = vsel %vm988, %v1862, 0
        %v1893 = vsel %vm988, %v1863, 0
        %v1896 = vsel %vm988, %v1864, 0
        %v1899 = vsel %vm988, %v1865, 0
        %v1902 = vsel %vm988, %v1866, 0
        %v1905 = vsel %vm988, %v1867, 0
        %v1908 = vsel %vm988, %v1868, 0
        %1910 = vmatpush.bf16.msra.mxu0 0
        %1911 = vmatpush.bf16.msra.mxu0 0
        %1912 = vmatpush.bf16.msra.mxu0 0
        %1913 = vmatpush.bf16.msra.mxu0 0
        %1914 = vmatpush.bf16.msra.mxu0 0
        %1915 = vmatpush.bf16.msra.mxu0 0
        %1916 = vmatpush.bf16.msra.mxu0 %v1883
        %1917 = vmatpush.bf16.msra.mxu0 %v1882
        %1918 = vmatmul.bf16.gmra.mxu0 %v1887
        %v1919 = vpop.f32.mrf.mxu0
        %v1920 = vadd.f32 0.0, %v1919
        %v1921 = vpop.f32.mrf.mxu0
        %v1922 = vadd.f32 0.0, %v1921
        %1923 = vmatmul.bf16.gmra.mxu0 %v1890
        %v1924 = vpop.f32.mrf.mxu0
        %v1925 = vadd.f32 0.0, %v1924
        %v1926 = vpop.f32.mrf.mxu0
        %v1927 = vadd.f32 0.0, %v1926
        %1928 = vmatmul.bf16.gmra.mxu0 %v1893
        %v1929 = vpop.f32.mrf.mxu0
        %v1930 = vadd.f32 0.0, %v1929
        %v1931 = vpop.f32.mrf.mxu0
        %v1932 = vadd.f32 0.0, %v1931
        %1933 = vmatmul.bf16.gmra.mxu0 %v1896
        %v1934 = vpop.f32.mrf.mxu0
        %v1935 = vadd.f32 0.0, %v1934
        %v1936 = vpop.f32.mrf.mxu0
        %v1937 = vadd.f32 0.0, %v1936
        %1938 = vmatmul.bf16.gmra.mxu0 %v1899
        %v1939 = vpop.f32.mrf.mxu0
        %v1940 = vadd.f32 0.0, %v1939
        %v1941 = vpop.f32.mrf.mxu0
        %v1942 = vadd.f32 0.0, %v1941
        %1943 = vmatmul.bf16.gmra.mxu0 %v1902
        %v1944 = vpop.f32.mrf.mxu0
        %v1945 = vadd.f32 0.0, %v1944
        %v1946 = vpop.f32.mrf.mxu0
        %v1947 = vadd.f32 0.0, %v1946
        %1948 = vmatmul.bf16.gmra.mxu0 %v1905
        %v1949 = vpop.f32.mrf.mxu0
        %v1950 = vadd.f32 0.0, %v1949
        %v1951 = vpop.f32.mrf.mxu0
        %v1952 = vadd.f32 0.0, %v1951
        %1953 = vmatmul.bf16.gmra.mxu0 %v1908
        %v1954 = vpop.f32.mrf.mxu0
        %v1955 = vadd.f32 0.0, %v1954
        %v1956 = vpop.f32.mrf.mxu0
        %v1957 = vadd.f32 0.0, %v1956
        %1958 = vdwg.mxu0
        %v1959 = vadd.f32 %v1732, %v1920
        %v1960 = vadd.f32 %v1733, %v1922
        %v1961 = vadd.f32 %v1734, %v1925
        %v1962 = vadd.f32 %v1735, %v1927
        %v1963 = vadd.f32 %v1736, %v1930
        %v1964 = vadd.f32 %v1737, %v1932
        %v1965 = vadd.f32 %v1738, %v1935
        %v1966 = vadd.f32 %v1739, %v1937
        %v1967 = vadd.f32 %v1740, %v1940
        %v1968 = vadd.f32 %v1741, %v1942
        %v1969 = vadd.f32 %v1742, %v1945
        %v1970 = vadd.f32 %v1743, %v1947
        %v1971 = vadd.f32 %v1744, %v1950
        %v1972 = vadd.f32 %v1745, %v1952
        %v1973 = vadd.f32 %v1746, %v1955
        %v1974 = vadd.f32 %v1747, %v1957
        %s1975 = scalar_lea.vmem %s1, 768
        %v1976 = vld [vmem:[%s1975] sm:$0xff]
        %v1977 = vld [vmem:[%s1975 + $0x8] sm:$0xff]
        %v1978 = vld [vmem:[%s1975 + $0x10] sm:$0xff]
        %v1979 = vld [vmem:[%s1975 + $0x18] sm:$0xff]
        %v1980 = vld [vmem:[%s1975 + $0x20] sm:$0xff]
        %v1981 = vld [vmem:[%s1975 + $0x28] sm:$0xff]
        %v1982 = vld [vmem:[%s1975 + $0x30] sm:$0xff]
        %v1983 = vld [vmem:[%s1975 + $0x38] sm:$0xff]
        %v1984 = vld [vmem:[%s1975 + $0x40] sm:$0xff]
        %v1985 = vld [vmem:[%s1975 + $0x48] sm:$0xff]
        %v1986 = vld [vmem:[%s1975 + $0x50] sm:$0xff]
        %v1987 = vld [vmem:[%s1975 + $0x58] sm:$0xff]
        %v1988 = vld [vmem:[%s1975 + $0x60] sm:$0xff]
        %v1989 = vld [vmem:[%s1975 + $0x68] sm:$0xff]
        %v1990 = vld [vmem:[%s1975 + $0x70] sm:$0xff]
        %v1991 = vld [vmem:[%s1975 + $0x78] sm:$0xff]
        %1993 = vset.pattern.permute.xlu0 0
        %1994 = vperm.xlu0 %1993, %v1976
        %v1995 = vpop.permute.xlu0 %1994
        %1998 = vset.pattern.permute.xlu0 0
        %1999 = vperm.xlu0 %1998, %v1977
        %v2000 = vpop.permute.xlu0 %1999
        %2003 = vset.pattern.permute.xlu0 0
        %2004 = vperm.xlu0 %2003, %v1978
        %v2005 = vpop.permute.xlu0 %2004
        %2008 = vset.pattern.permute.xlu0 0
        %2009 = vperm.xlu0 %2008, %v1979
        %v2010 = vpop.permute.xlu0 %2009
        %2013 = vset.pattern.permute.xlu0 0
        %2014 = vperm.xlu0 %2013, %v1980
        %v2015 = vpop.permute.xlu0 %2014
        %2018 = vset.pattern.permute.xlu0 0
        %2019 = vperm.xlu0 %2018, %v1981
        %v2020 = vpop.permute.xlu0 %2019
        %2023 = vset.pattern.permute.xlu0 0
        %2024 = vperm.xlu0 %2023, %v1982
        %v2025 = vpop.permute.xlu0 %2024
        %2028 = vset.pattern.permute.xlu0 0
        %2029 = vperm.xlu0 %2028, %v1983
        %v2030 = vpop.permute.xlu0 %2029
        %2033 = vset.pattern.permute.xlu0 0
        %2034 = vperm.xlu0 %2033, %v1984
        %v2035 = vpop.permute.xlu0 %2034
        %2038 = vset.pattern.permute.xlu0 0
        %2039 = vperm.xlu0 %2038, %v1985
        %v2040 = vpop.permute.xlu0 %2039
        %2043 = vset.pattern.permute.xlu0 0
        %2044 = vperm.xlu0 %2043, %v1986
        %v2045 = vpop.permute.xlu0 %2044
        %2048 = vset.pattern.permute.xlu0 0
        %2049 = vperm.xlu0 %2048, %v1987
        %v2050 = vpop.permute.xlu0 %2049
        %2053 = vset.pattern.permute.xlu0 0
        %2054 = vperm.xlu0 %2053, %v1988
        %v2055 = vpop.permute.xlu0 %2054
        %2058 = vset.pattern.permute.xlu0 0
        %2059 = vperm.xlu0 %2058, %v1989
        %v2060 = vpop.permute.xlu0 %2059
        %2063 = vset.pattern.permute.xlu0 0
        %2064 = vperm.xlu0 %2063, %v1990
        %v2065 = vpop.permute.xlu0 %2064
        %2068 = vset.pattern.permute.xlu0 0
        %2069 = vperm.xlu0 %2068, %v1991
        %v2070 = vpop.permute.xlu0 %2069
        %v2072 = vmul.f32 %v724, %v1995
        %v2073 = vmul.f32 %v723, %v2000
        %v2074 = vmul.f32 %v722, %v2005
        %v2075 = vmul.f32 %v721, %v2010
        %v2076 = vmul.f32 %v720, %v2015
        %v2077 = vmul.f32 %v719, %v2020
        %v2078 = vmul.f32 %v718, %v2025
        %v2079 = vmul.f32 %v717, %v2030
        %v2080 = vmul.f32 %v716, %v2035
        %v2081 = vmul.f32 %v715, %v2040
        %v2082 = vmul.f32 %v714, %v2045
        %v2083 = vmul.f32 %v713, %v2050
        %v2084 = vmul.f32 %v712, %v2055
        %v2085 = vmul.f32 %v711, %v2060
        %v2086 = vmul.f32 %v710, %v2065
        %v2087 = vmul.f32 %v725, %v2070
        %v2088 = vpack.c.bf16 %v2073, %v2072
        %v2089 = vpack.c.bf16 %v2075, %v2074
        %v2090 = vpack.c.bf16 %v2077, %v2076
        %v2091 = vpack.c.bf16 %v2079, %v2078
        %v2092 = vpack.c.bf16 %v2081, %v2080
        %v2093 = vpack.c.bf16 %v2083, %v2082
        %v2094 = vpack.c.bf16 %v2085, %v2084
        %v2095 = vpack.c.bf16 %v2087, %v2086
        %s2096 = scalar_lea.vmem %s5, 96
        %v2097 = vld [vmem:[%s2096] sm:$0xf]
        %v2098 = vld [vmem:[%s2096 + $0x4] sm:$0xf]
        %v2099 = vld [vmem:[%s2096 + $0x8] sm:$0xf]
        %v2100 = vld [vmem:[%s2096 + $0xc] sm:$0xf]
        %v2105 = vunpack.c.l.b16 %v2097
        %v2106 = vunpack.c.l.b16 %v2098
        %v2107 = vunpack.c.l.b16 %v2099
        %v2108 = vunpack.c.l.b16 %v2100
        %v2109 = vpack.c.b16 %v2106, %v2105
        %v2110 = vpack.c.b16 %v2108, %v2107
        %v2114 = vsel %vm988, %v2088, 0
        %v2117 = vsel %vm988, %v2089, 0
        %v2120 = vsel %vm988, %v2090, 0
        %v2123 = vsel %vm988, %v2091, 0
        %v2126 = vsel %vm988, %v2092, 0
        %v2129 = vsel %vm988, %v2093, 0
        %v2132 = vsel %vm988, %v2094, 0
        %v2135 = vsel %vm988, %v2095, 0
        %2137 = vmatpush.bf16.msra.mxu0 0
        %2138 = vmatpush.bf16.msra.mxu0 0
        %2139 = vmatpush.bf16.msra.mxu0 0
        %2140 = vmatpush.bf16.msra.mxu0 0
        %2141 = vmatpush.bf16.msra.mxu0 0
        %2142 = vmatpush.bf16.msra.mxu0 0
        %2143 = vmatpush.bf16.msra.mxu0 %v2110
        %2144 = vmatpush.bf16.msra.mxu0 %v2109
        %2145 = vmatmul.bf16.gmra.mxu0 %v2114
        %v2146 = vpop.f32.mrf.mxu0
        %v2147 = vadd.f32 0.0, %v2146
        %v2148 = vpop.f32.mrf.mxu0
        %v2149 = vadd.f32 0.0, %v2148
        %2150 = vmatmul.bf16.gmra.mxu0 %v2117
        %v2151 = vpop.f32.mrf.mxu0
        %v2152 = vadd.f32 0.0, %v2151
        %v2153 = vpop.f32.mrf.mxu0
        %v2154 = vadd.f32 0.0, %v2153
        %2155 = vmatmul.bf16.gmra.mxu0 %v2120
        %v2156 = vpop.f32.mrf.mxu0
        %v2157 = vadd.f32 0.0, %v2156
        %v2158 = vpop.f32.mrf.mxu0
        %v2159 = vadd.f32 0.0, %v2158
        %2160 = vmatmul.bf16.gmra.mxu0 %v2123
        %v2161 = vpop.f32.mrf.mxu0
        %v2162 = vadd.f32 0.0, %v2161
        %v2163 = vpop.f32.mrf.mxu0
        %v2164 = vadd.f32 0.0, %v2163
        %2165 = vmatmul.bf16.gmra.mxu0 %v2126
        %v2166 = vpop.f32.mrf.mxu0
        %v2167 = vadd.f32 0.0, %v2166
        %v2168 = vpop.f32.mrf.mxu0
        %v2169 = vadd.f32 0.0, %v2168
        %2170 = vmatmul.bf16.gmra.mxu0 %v2129
        %v2171 = vpop.f32.mrf.mxu0
        %v2172 = vadd.f32 0.0, %v2171
        %v2173 = vpop.f32.mrf.mxu0
        %v2174 = vadd.f32 0.0, %v2173
        %2175 = vmatmul.bf16.gmra.mxu0 %v2132
        %v2176 = vpop.f32.mrf.mxu0
        %v2177 = vadd.f32 0.0, %v2176
        %v2178 = vpop.f32.mrf.mxu0
        %v2179 = vadd.f32 0.0, %v2178
        %2180 = vmatmul.bf16.gmra.mxu0 %v2135
        %v2181 = vpop.f32.mrf.mxu0
        %v2182 = vadd.f32 0.0, %v2181
        %v2183 = vpop.f32.mrf.mxu0
        %v2184 = vadd.f32 0.0, %v2183
        %2185 = vdwg.mxu0
        %v2186 = vadd.f32 %v1959, %v2147
        %v2187 = vadd.f32 %v1960, %v2149
        %v2188 = vadd.f32 %v1961, %v2152
        %v2189 = vadd.f32 %v1962, %v2154
        %v2190 = vadd.f32 %v1963, %v2157
        %v2191 = vadd.f32 %v1964, %v2159
        %v2192 = vadd.f32 %v1965, %v2162
        %v2193 = vadd.f32 %v1966, %v2164
        %v2194 = vadd.f32 %v1967, %v2167
        %v2195 = vadd.f32 %v1968, %v2169
        %v2196 = vadd.f32 %v1969, %v2172
        %v2197 = vadd.f32 %v1970, %v2174
        %v2198 = vadd.f32 %v1971, %v2177
        %v2199 = vadd.f32 %v1972, %v2179
        %v2200 = vadd.f32 %v1973, %v2182
        %v2201 = vadd.f32 %v1974, %v2184
        %s2202 = scalar_lea.vmem %s1, 896
        %v2203 = vld [vmem:[%s2202] sm:$0xff]
        %v2204 = vld [vmem:[%s2202 + $0x8] sm:$0xff]
        %v2205 = vld [vmem:[%s2202 + $0x10] sm:$0xff]
        %v2206 = vld [vmem:[%s2202 + $0x18] sm:$0xff]
        %v2207 = vld [vmem:[%s2202 + $0x20] sm:$0xff]
        %v2208 = vld [vmem:[%s2202 + $0x28] sm:$0xff]
        %v2209 = vld [vmem:[%s2202 + $0x30] sm:$0xff]
        %v2210 = vld [vmem:[%s2202 + $0x38] sm:$0xff]
        %v2211 = vld [vmem:[%s2202 + $0x40] sm:$0xff]
        %v2212 = vld [vmem:[%s2202 + $0x48] sm:$0xff]
        %v2213 = vld [vmem:[%s2202 + $0x50] sm:$0xff]
        %v2214 = vld [vmem:[%s2202 + $0x58] sm:$0xff]
        %v2215 = vld [vmem:[%s2202 + $0x60] sm:$0xff]
        %v2216 = vld [vmem:[%s2202 + $0x68] sm:$0xff]
        %v2217 = vld [vmem:[%s2202 + $0x70] sm:$0xff]
        %v2218 = vld [vmem:[%s2202 + $0x78] sm:$0xff]
        %2220 = vset.pattern.permute.xlu0 0
        %2221 = vperm.xlu0 %2220, %v2203
        %v2222 = vpop.permute.xlu0 %2221
        %2225 = vset.pattern.permute.xlu0 0
        %2226 = vperm.xlu0 %2225, %v2204
        %v2227 = vpop.permute.xlu0 %2226
        %2230 = vset.pattern.permute.xlu0 0
        %2231 = vperm.xlu0 %2230, %v2205
        %v2232 = vpop.permute.xlu0 %2231
        %2235 = vset.pattern.permute.xlu0 0
        %2236 = vperm.xlu0 %2235, %v2206
        %v2237 = vpop.permute.xlu0 %2236
        %2240 = vset.pattern.permute.xlu0 0
        %2241 = vperm.xlu0 %2240, %v2207
        %v2242 = vpop.permute.xlu0 %2241
        %2245 = vset.pattern.permute.xlu0 0
        %2246 = vperm.xlu0 %2245, %v2208
        %v2247 = vpop.permute.xlu0 %2246
        %2250 = vset.pattern.permute.xlu0 0
        %2251 = vperm.xlu0 %2250, %v2209
        %v2252 = vpop.permute.xlu0 %2251
        %2255 = vset.pattern.permute.xlu0 0
        %2256 = vperm.xlu0 %2255, %v2210
        %v2257 = vpop.permute.xlu0 %2256
        %2260 = vset.pattern.permute.xlu0 0
        %2261 = vperm.xlu0 %2260, %v2211
        %v2262 = vpop.permute.xlu0 %2261
        %2265 = vset.pattern.permute.xlu0 0
        %2266 = vperm.xlu0 %2265, %v2212
        %v2267 = vpop.permute.xlu0 %2266
        %2270 = vset.pattern.permute.xlu0 0
        %2271 = vperm.xlu0 %2270, %v2213
        %v2272 = vpop.permute.xlu0 %2271
        %2275 = vset.pattern.permute.xlu0 0
        %2276 = vperm.xlu0 %2275, %v2214
        %v2277 = vpop.permute.xlu0 %2276
        %2280 = vset.pattern.permute.xlu0 0
        %2281 = vperm.xlu0 %2280, %v2215
        %v2282 = vpop.permute.xlu0 %2281
        %2285 = vset.pattern.permute.xlu0 0
        %2286 = vperm.xlu0 %2285, %v2216
        %v2287 = vpop.permute.xlu0 %2286
        %2290 = vset.pattern.permute.xlu0 0
        %2291 = vperm.xlu0 %2290, %v2217
        %v2292 = vpop.permute.xlu0 %2291
        %2295 = vset.pattern.permute.xlu0 0
        %2296 = vperm.xlu0 %2295, %v2218
        %v2297 = vpop.permute.xlu0 %2296
        %v2299 = vmul.f32 %v676, %v2222
        %v2300 = vmul.f32 %v677, %v2227
        %v2301 = vmul.f32 %v678, %v2232
        %v2302 = vmul.f32 %v679, %v2237
        %v2303 = vmul.f32 %v680, %v2242
        %v2304 = vmul.f32 %v681, %v2247
        %v2305 = vmul.f32 %v682, %v2252
        %v2306 = vmul.f32 %v683, %v2257
        %v2307 = vmul.f32 %v684, %v2262
        %v2308 = vmul.f32 %v685, %v2267
        %v2309 = vmul.f32 %v686, %v2272
        %v2310 = vmul.f32 %v687, %v2277
        %v2311 = vmul.f32 %v688, %v2282
        %v2312 = vmul.f32 %v689, %v2287
        %v2313 = vmul.f32 %v690, %v2292
        %v2314 = vmul.f32 %v675, %v2297
        %v2315 = vpack.c.bf16 %v2300, %v2299
        %v2316 = vpack.c.bf16 %v2302, %v2301
        %v2317 = vpack.c.bf16 %v2304, %v2303
        %v2318 = vpack.c.bf16 %v2306, %v2305
        %v2319 = vpack.c.bf16 %v2308, %v2307
        %v2320 = vpack.c.bf16 %v2310, %v2309
        %v2321 = vpack.c.bf16 %v2312, %v2311
        %v2322 = vpack.c.bf16 %v2314, %v2313
        %s2323 = scalar_lea.vmem %s5, 112
        %v2324 = vld [vmem:[%s2323] sm:$0xf]
        %v2325 = vld [vmem:[%s2323 + $0x4] sm:$0xf]
        %v2326 = vld [vmem:[%s2323 + $0x8] sm:$0xf]
        %v2327 = vld [vmem:[%s2323 + $0xc] sm:$0xf]
        %v2332 = vunpack.c.l.b16 %v2324
        %v2333 = vunpack.c.l.b16 %v2325
        %v2334 = vunpack.c.l.b16 %v2326
        %v2335 = vunpack.c.l.b16 %v2327
        %v2336 = vpack.c.b16 %v2333, %v2332
        %v2337 = vpack.c.b16 %v2335, %v2334
        %v2341 = vsel %vm988, %v2315, 0
        %v2344 = vsel %vm988, %v2316, 0
        %v2347 = vsel %vm988, %v2317, 0
        %v2350 = vsel %vm988, %v2318, 0
        %v2353 = vsel %vm988, %v2319, 0
        %v2356 = vsel %vm988, %v2320, 0
        %v2359 = vsel %vm988, %v2321, 0
        %v2362 = vsel %vm988, %v2322, 0
        %2364 = vmatpush.bf16.msra.mxu0 0
        %2365 = vmatpush.bf16.msra.mxu0 0
        %2366 = vmatpush.bf16.msra.mxu0 0
        %2367 = vmatpush.bf16.msra.mxu0 0
        %2368 = vmatpush.bf16.msra.mxu0 0
        %2369 = vmatpush.bf16.msra.mxu0 0
        %2370 = vmatpush.bf16.msra.mxu0 %v2337
        %2371 = vmatpush.bf16.msra.mxu0 %v2336
        %2372 = vmatmul.bf16.gmra.mxu0 %v2341
        %v2373 = vpop.f32.mrf.mxu0
        %v2374 = vadd.f32 0.0, %v2373
        %v2375 = vpop.f32.mrf.mxu0
        %v2376 = vadd.f32 0.0, %v2375
        %2377 = vmatmul.bf16.gmra.mxu0 %v2344
        %v2378 = vpop.f32.mrf.mxu0
        %v2379 = vadd.f32 0.0, %v2378
        %v2380 = vpop.f32.mrf.mxu0
        %v2381 = vadd.f32 0.0, %v2380
        %2382 = vmatmul.bf16.gmra.mxu0 %v2347
        %v2383 = vpop.f32.mrf.mxu0
        %v2384 = vadd.f32 0.0, %v2383
        %v2385 = vpop.f32.mrf.mxu0
        %v2386 = vadd.f32 0.0, %v2385
        %2387 = vmatmul.bf16.gmra.mxu0 %v2350
        %v2388 = vpop.f32.mrf.mxu0
        %v2389 = vadd.f32 0.0, %v2388
        %v2390 = vpop.f32.mrf.mxu0
        %v2391 = vadd.f32 0.0, %v2390
        %2392 = vmatmul.bf16.gmra.mxu0 %v2353
        %v2393 = vpop.f32.mrf.mxu0
        %v2394 = vadd.f32 0.0, %v2393
        %v2395 = vpop.f32.mrf.mxu0
        %v2396 = vadd.f32 0.0, %v2395
        %2397 = vmatmul.bf16.gmra.mxu0 %v2356
        %v2398 = vpop.f32.mrf.mxu0
        %v2399 = vadd.f32 0.0, %v2398
        %v2400 = vpop.f32.mrf.mxu0
        %v2401 = vadd.f32 0.0, %v2400
        %2402 = vmatmul.bf16.gmra.mxu0 %v2359
        %v2403 = vpop.f32.mrf.mxu0
        %v2404 = vadd.f32 0.0, %v2403
        %v2405 = vpop.f32.mrf.mxu0
        %v2406 = vadd.f32 0.0, %v2405
        %2407 = vmatmul.bf16.gmra.mxu0 %v2362
        %v2408 = vpop.f32.mrf.mxu0
        %v2409 = vadd.f32 0.0, %v2408
        %v2410 = vpop.f32.mrf.mxu0
        %v2411 = vadd.f32 0.0, %v2410
        %2412 = vdwg.mxu0
        %v2413 = vadd.f32 %v2186, %v2374
        %v2414 = vadd.f32 %v2187, %v2376
        %v2415 = vadd.f32 %v2188, %v2379
        %v2416 = vadd.f32 %v2189, %v2381
        %v2417 = vadd.f32 %v2190, %v2384
        %v2418 = vadd.f32 %v2191, %v2386
        %v2419 = vadd.f32 %v2192, %v2389
        %v2420 = vadd.f32 %v2193, %v2391
        %v2421 = vadd.f32 %v2194, %v2394
        %v2422 = vadd.f32 %v2195, %v2396
        %v2423 = vadd.f32 %v2196, %v2399
        %v2424 = vadd.f32 %v2197, %v2401
        %v2425 = vadd.f32 %v2198, %v2404
        %v2426 = vadd.f32 %v2199, %v2406
        %v2427 = vadd.f32 %v2200, %v2409
        %v2428 = vadd.f32 %v2201, %v2411
        %s2429 = scalar_lea.vmem %s1, 1024
        %v2430 = vld [vmem:[%s2429] sm:$0xff]
        %v2431 = vld [vmem:[%s2429 + $0x8] sm:$0xff]
        %v2432 = vld [vmem:[%s2429 + $0x10] sm:$0xff]
        %v2433 = vld [vmem:[%s2429 + $0x18] sm:$0xff]
        %v2434 = vld [vmem:[%s2429 + $0x20] sm:$0xff]
        %v2435 = vld [vmem:[%s2429 + $0x28] sm:$0xff]
        %v2436 = vld [vmem:[%s2429 + $0x30] sm:$0xff]
        %v2437 = vld [vmem:[%s2429 + $0x38] sm:$0xff]
        %v2438 = vld [vmem:[%s2429 + $0x40] sm:$0xff]
        %v2439 = vld [vmem:[%s2429 + $0x48] sm:$0xff]
        %v2440 = vld [vmem:[%s2429 + $0x50] sm:$0xff]
        %v2441 = vld [vmem:[%s2429 + $0x58] sm:$0xff]
        %v2442 = vld [vmem:[%s2429 + $0x60] sm:$0xff]
        %v2443 = vld [vmem:[%s2429 + $0x68] sm:$0xff]
        %v2444 = vld [vmem:[%s2429 + $0x70] sm:$0xff]
        %v2445 = vld [vmem:[%s2429 + $0x78] sm:$0xff]
        %2447 = vset.pattern.permute.xlu0 0
        %2448 = vperm.xlu0 %2447, %v2430
        %v2449 = vpop.permute.xlu0 %2448
        %2452 = vset.pattern.permute.xlu0 0
        %2453 = vperm.xlu0 %2452, %v2431
        %v2454 = vpop.permute.xlu0 %2453
        %2457 = vset.pattern.permute.xlu0 0
        %2458 = vperm.xlu0 %2457, %v2432
        %v2459 = vpop.permute.xlu0 %2458
        %2462 = vset.pattern.permute.xlu0 0
        %2463 = vperm.xlu0 %2462, %v2433
        %v2464 = vpop.permute.xlu0 %2463
        %2467 = vset.pattern.permute.xlu0 0
        %2468 = vperm.xlu0 %2467, %v2434
        %v2469 = vpop.permute.xlu0 %2468
        %2472 = vset.pattern.permute.xlu0 0
        %2473 = vperm.xlu0 %2472, %v2435
        %v2474 = vpop.permute.xlu0 %2473
        %2477 = vset.pattern.permute.xlu0 0
        %2478 = vperm.xlu0 %2477, %v2436
        %v2479 = vpop.permute.xlu0 %2478
        %2482 = vset.pattern.permute.xlu0 0
        %2483 = vperm.xlu0 %2482, %v2437
        %v2484 = vpop.permute.xlu0 %2483
        %2487 = vset.pattern.permute.xlu0 0
        %2488 = vperm.xlu0 %2487, %v2438
        %v2489 = vpop.permute.xlu0 %2488
        %2492 = vset.pattern.permute.xlu0 0
        %2493 = vperm.xlu0 %2492, %v2439
        %v2494 = vpop.permute.xlu0 %2493
        %2497 = vset.pattern.permute.xlu0 0
        %2498 = vperm.xlu0 %2497, %v2440
        %v2499 = vpop.permute.xlu0 %2498
        %2502 = vset.pattern.permute.xlu0 0
        %2503 = vperm.xlu0 %2502, %v2441
        %v2504 = vpop.permute.xlu0 %2503
        %2507 = vset.pattern.permute.xlu0 0
        %2508 = vperm.xlu0 %2507, %v2442
        %v2509 = vpop.permute.xlu0 %2508
        %2512 = vset.pattern.permute.xlu0 0
        %2513 = vperm.xlu0 %2512, %v2443
        %v2514 = vpop.permute.xlu0 %2513
        %2517 = vset.pattern.permute.xlu0 0
        %2518 = vperm.xlu0 %2517, %v2444
        %v2519 = vpop.permute.xlu0 %2518
        %2522 = vset.pattern.permute.xlu0 0
        %2523 = vperm.xlu0 %2522, %v2445
        %v2524 = vpop.permute.xlu0 %2523
        %v2526 = vmul.f32 %v1177, %v2449
        %v2527 = vmul.f32 %v1176, %v2454
        %v2528 = vmul.f32 %v1175, %v2459
        %v2529 = vmul.f32 %v1174, %v2464
        %v2530 = vmul.f32 %v1173, %v2469
        %v2531 = vmul.f32 %v1172, %v2474
        %v2532 = vmul.f32 %v1171, %v2479
        %v2533 = vmul.f32 %v1170, %v2484
        %v2534 = vmul.f32 %v1169, %v2489
        %v2535 = vmul.f32 %v1168, %v2494
        %v2536 = vmul.f32 %v1167, %v2499
        %v2537 = vmul.f32 %v1166, %v2504
        %v2538 = vmul.f32 %v1165, %v2509
        %v2539 = vmul.f32 %v1164, %v2514
        %v2540 = vmul.f32 %v1179, %v2519
        %v2541 = vmul.f32 %v1178, %v2524
        %v2542 = vpack.c.bf16 %v2527, %v2526
        %v2543 = vpack.c.bf16 %v2529, %v2528
        %v2544 = vpack.c.bf16 %v2531, %v2530
        %v2545 = vpack.c.bf16 %v2533, %v2532
        %v2546 = vpack.c.bf16 %v2535, %v2534
        %v2547 = vpack.c.bf16 %v2537, %v2536
        %v2548 = vpack.c.bf16 %v2539, %v2538
        %v2549 = vpack.c.bf16 %v2541, %v2540
        %s2550 = scalar_lea.vmem %s5, 128
        %v2551 = vld [vmem:[%s2550] sm:$0xf]
        %v2552 = vld [vmem:[%s2550 + $0x4] sm:$0xf]
        %v2553 = vld [vmem:[%s2550 + $0x8] sm:$0xf]
        %v2554 = vld [vmem:[%s2550 + $0xc] sm:$0xf]
        %v2559 = vunpack.c.l.b16 %v2551
        %v2560 = vunpack.c.l.b16 %v2552
        %v2561 = vunpack.c.l.b16 %v2553
        %v2562 = vunpack.c.l.b16 %v2554
        %v2563 = vpack.c.b16 %v2560, %v2559
        %v2564 = vpack.c.b16 %v2562, %v2561
        %v2568 = vsel %vm988, %v2542, 0
        %v2571 = vsel %vm988, %v2543, 0
        %v2574 = vsel %vm988, %v2544, 0
        %v2577 = vsel %vm988, %v2545, 0
        %v2580 = vsel %vm988, %v2546, 0
        %v2583 = vsel %vm988, %v2547, 0
        %v2586 = vsel %vm988, %v2548, 0
        %v2589 = vsel %vm988, %v2549, 0
        %2591 = vmatpush.bf16.msra.mxu0 0
        %2592 = vmatpush.bf16.msra.mxu0 0
        %2593 = vmatpush.bf16.msra.mxu0 0
        %2594 = vmatpush.bf16.msra.mxu0 0
        %2595 = vmatpush.bf16.msra.mxu0 0
        %2596 = vmatpush.bf16.msra.mxu0 0
        %2597 = vmatpush.bf16.msra.mxu0 %v2564
        %2598 = vmatpush.bf16.msra.mxu0 %v2563
        %2599 = vmatmul.bf16.gmra.mxu0 %v2568
        %v2600 = vpop.f32.mrf.mxu0
        %v2601 = vadd.f32 0.0, %v2600
        %v2602 = vpop.f32.mrf.mxu0
        %v2603 = vadd.f32 0.0, %v2602
        %2604 = vmatmul.bf16.gmra.mxu0 %v2571
        %v2605 = vpop.f32.mrf.mxu0
        %v2606 = vadd.f32 0.0, %v2605
        %v2607 = vpop.f32.mrf.mxu0
        %v2608 = vadd.f32 0.0, %v2607
        %2609 = vmatmul.bf16.gmra.mxu0 %v2574
        %v2610 = vpop.f32.mrf.mxu0
        %v2611 = vadd.f32 0.0, %v2610
        %v2612 = vpop.f32.mrf.mxu0
        %v2613 = vadd.f32 0.0, %v2612
        %2614 = vmatmul.bf16.gmra.mxu0 %v2577
        %v2615 = vpop.f32.mrf.mxu0
        %v2616 = vadd.f32 0.0, %v2615
        %v2617 = vpop.f32.mrf.mxu0
        %v2618 = vadd.f32 0.0, %v2617
        %2619 = vmatmul.bf16.gmra.mxu0 %v2580
        %v2620 = vpop.f32.mrf.mxu0
        %v2621 = vadd.f32 0.0, %v2620
        %v2622 = vpop.f32.mrf.mxu0
        %v2623 = vadd.f32 0.0, %v2622
        %2624 = vmatmul.bf16.gmra.mxu0 %v2583
        %v2625 = vpop.f32.mrf.mxu0
        %v2626 = vadd.f32 0.0, %v2625
        %v2627 = vpop.f32.mrf.mxu0
        %v2628 = vadd.f32 0.0, %v2627
        %2629 = vmatmul.bf16.gmra.mxu0 %v2586
        %v2630 = vpop.f32.mrf.mxu0
        %v2631 = vadd.f32 0.0, %v2630
        %v2632 = vpop.f32.mrf.mxu0
        %v2633 = vadd.f32 0.0, %v2632
        %2634 = vmatmul.bf16.gmra.mxu0 %v2589
        %v2635 = vpop.f32.mrf.mxu0
        %v2636 = vadd.f32 0.0, %v2635
        %v2637 = vpop.f32.mrf.mxu0
        %v2638 = vadd.f32 0.0, %v2637
        %2639 = vdwg.mxu0
        %v2640 = vadd.f32 %v2413, %v2601
        %v2641 = vadd.f32 %v2414, %v2603
        %v2642 = vadd.f32 %v2415, %v2606
        %v2643 = vadd.f32 %v2416, %v2608
        %v2644 = vadd.f32 %v2417, %v2611
        %v2645 = vadd.f32 %v2418, %v2613
        %v2646 = vadd.f32 %v2419, %v2616
        %v2647 = vadd.f32 %v2420, %v2618
        %v2648 = vadd.f32 %v2421, %v2621
        %v2649 = vadd.f32 %v2422, %v2623
        %v2650 = vadd.f32 %v2423, %v2626
        %v2651 = vadd.f32 %v2424, %v2628
        %v2652 = vadd.f32 %v2425, %v2631
        %v2653 = vadd.f32 %v2426, %v2633
        %v2654 = vadd.f32 %v2427, %v2636
        %v2655 = vadd.f32 %v2428, %v2638
        %v2656 = vld [vmem:[%s6] sm:$0x1]
        %v2658 = vperm.slane %v2656, 0
        %v2660 = vmul.f32 %v2640, %v2658
        %v2661 = vmul.f32 %v2641, %v2658
        %v2662 = vmul.f32 %v2642, %v2658
        %v2663 = vmul.f32 %v2643, %v2658
        %v2664 = vmul.f32 %v2644, %v2658
        %v2665 = vmul.f32 %v2645, %v2658
        %v2666 = vmul.f32 %v2646, %v2658
        %v2667 = vmul.f32 %v2647, %v2658
        %v2668 = vmul.f32 %v2648, %v2658
        %v2669 = vmul.f32 %v2649, %v2658
        %v2670 = vmul.f32 %v2650, %v2658
        %v2671 = vmul.f32 %v2651, %v2658
        %v2672 = vmul.f32 %v2652, %v2658
        %v2673 = vmul.f32 %v2653, %v2658
        %v2674 = vmul.f32 %v2654, %v2658
        %v2675 = vmul.f32 %v2655, %v2658
        %v2676 = vld [vmem:[%s7] sm:$0x1]
        %v2678 = vperm.slane %v2676, 0
        %v2680 = vadd.f32 %v2660, %v2678
        %v2681 = vadd.f32 %v2661, %v2678
        %v2682 = vadd.f32 %v2662, %v2678
        %v2683 = vadd.f32 %v2663, %v2678
        %v2684 = vadd.f32 %v2664, %v2678
        %v2685 = vadd.f32 %v2665, %v2678
        %v2686 = vadd.f32 %v2666, %v2678
        %v2687 = vadd.f32 %v2667, %v2678
        %v2688 = vadd.f32 %v2668, %v2678
        %v2689 = vadd.f32 %v2669, %v2678
        %v2690 = vadd.f32 %v2670, %v2678
        %v2691 = vadd.f32 %v2671, %v2678
        %v2692 = vadd.f32 %v2672, %v2678
        %v2693 = vadd.f32 %v2673, %v2678
        %v2694 = vadd.f32 %v2674, %v2678
        %v2695 = vadd.f32 %v2675, %v2678
        %v2696 = vmax.f32 %v2680, 0.0
        %v2697 = vmax.f32 %v2681, 0.0
        %v2698 = vmax.f32 %v2682, 0.0
        %v2699 = vmax.f32 %v2683, 0.0
        %v2700 = vmax.f32 %v2684, 0.0
        %v2701 = vmax.f32 %v2685, 0.0
        %v2702 = vmax.f32 %v2686, 0.0
        %v2703 = vmax.f32 %v2687, 0.0
        %v2704 = vmax.f32 %v2688, 0.0
        %v2705 = vmax.f32 %v2689, 0.0
        %v2706 = vmax.f32 %v2690, 0.0
        %v2707 = vmax.f32 %v2691, 0.0
        %v2708 = vmax.f32 %v2692, 0.0
        %v2709 = vmax.f32 %v2693, 0.0
        %v2710 = vmax.f32 %v2694, 0.0
        %v2711 = vmax.f32 %v2695, 0.0
        %v2712 = vpack.c.bf16 %v2697, %v2696
        %v2713 = vpack.c.bf16 %v2699, %v2698
        %v2714 = vpack.c.bf16 %v2701, %v2700
        %v2715 = vpack.c.bf16 %v2703, %v2702
        %v2716 = vpack.c.bf16 %v2705, %v2704
        %v2717 = vpack.c.bf16 %v2707, %v2706
        %v2718 = vpack.c.bf16 %v2709, %v2708
        %v2719 = vpack.c.bf16 %v2711, %v2710
        %v2720 = vld [vmem:[%s8] sm:$0xf]
        %v2721 = vld [vmem:[%s8 + $0x4] sm:$0xf]
        %v2722 = vld [vmem:[%s8 + $0x8] sm:$0xf]
        %v2723 = vld [vmem:[%s8 + $0xc] sm:$0xf]
        %v2728 = vunpack.c.l.b16 %v2720
        %v2729 = vunpack.c.l.b16 %v2721
        %v2730 = vunpack.c.l.b16 %v2722
        %v2731 = vunpack.c.l.b16 %v2723
        %v2732 = vpack.c.b16 %v2729, %v2728
        %v2733 = vpack.c.b16 %v2731, %v2730
        %v2737 = vsel %vm988, %v2712, 0
        %v2740 = vsel %vm988, %v2713, 0
        %v2743 = vsel %vm988, %v2714, 0
        %v2746 = vsel %vm988, %v2715, 0
        %v2749 = vsel %vm988, %v2716, 0
        %v2752 = vsel %vm988, %v2717, 0
        %v2755 = vsel %vm988, %v2718, 0
        %v2758 = vsel %vm988, %v2719, 0
        %2760 = vmatpush.bf16.msra.mxu0 0
        %2761 = vmatpush.bf16.msra.mxu0 0
        %2762 = vmatpush.bf16.msra.mxu0 0
        %2763 = vmatpush.bf16.msra.mxu0 0
        %2764 = vmatpush.bf16.msra.mxu0 0
        %2765 = vmatpush.bf16.msra.mxu0 0
        %2766 = vmatpush.bf16.msra.mxu0 %v2733
        %2767 = vmatpush.bf16.msra.mxu0 %v2732
        %2768 = vmatmul.bf16.gmra.mxu0 %v2737
        %v2769 = vpop.f32.mrf.mxu0
        %v2770 = vadd.f32 0.0, %v2769
        %v2771 = vpop.f32.mrf.mxu0
        %v2772 = vadd.f32 0.0, %v2771
        %2773 = vmatmul.bf16.gmra.mxu0 %v2740
        %v2774 = vpop.f32.mrf.mxu0
        %v2775 = vadd.f32 0.0, %v2774
        %v2776 = vpop.f32.mrf.mxu0
        %v2777 = vadd.f32 0.0, %v2776
        %2778 = vmatmul.bf16.gmra.mxu0 %v2743
        %v2779 = vpop.f32.mrf.mxu0
        %v2780 = vadd.f32 0.0, %v2779
        %v2781 = vpop.f32.mrf.mxu0
        %v2782 = vadd.f32 0.0, %v2781
        %2783 = vmatmul.bf16.gmra.mxu0 %v2746
        %v2784 = vpop.f32.mrf.mxu0
        %v2785 = vadd.f32 0.0, %v2784
        %v2786 = vpop.f32.mrf.mxu0
        %v2787 = vadd.f32 0.0, %v2786
        %2788 = vmatmul.bf16.gmra.mxu0 %v2749
        %v2789 = vpop.f32.mrf.mxu0
        %v2790 = vadd.f32 0.0, %v2789
        %v2791 = vpop.f32.mrf.mxu0
        %v2792 = vadd.f32 0.0, %v2791
        %2793 = vmatmul.bf16.gmra.mxu0 %v2752
        %v2794 = vpop.f32.mrf.mxu0
        %v2795 = vadd.f32 0.0, %v2794
        %v2796 = vpop.f32.mrf.mxu0
        %v2797 = vadd.f32 0.0, %v2796
        %2798 = vmatmul.bf16.gmra.mxu0 %v2755
        %v2799 = vpop.f32.mrf.mxu0
        %v2800 = vadd.f32 0.0, %v2799
        %v2801 = vpop.f32.mrf.mxu0
        %v2802 = vadd.f32 0.0, %v2801
        %2803 = vmatmul.bf16.gmra.mxu0 %v2758
        %v2804 = vpop.f32.mrf.mxu0
        %v2805 = vadd.f32 0.0, %v2804
        %v2806 = vpop.f32.mrf.mxu0
        %v2807 = vadd.f32 0.0, %v2806
        %2808 = vdwg.mxu0
        %v2809 = vld [vmem:[%s9] sm:$0x1]
        %v2811 = vperm.slane %v2809, 0
        %v2813 = vmul.f32 %v2770, %v2811
        %v2814 = vmul.f32 %v2772, %v2811
        %v2815 = vmul.f32 %v2775, %v2811
        %v2816 = vmul.f32 %v2777, %v2811
        %v2817 = vmul.f32 %v2780, %v2811
        %v2818 = vmul.f32 %v2782, %v2811
        %v2819 = vmul.f32 %v2785, %v2811
        %v2820 = vmul.f32 %v2787, %v2811
        %v2821 = vmul.f32 %v2790, %v2811
        %v2822 = vmul.f32 %v2792, %v2811
        %v2823 = vmul.f32 %v2795, %v2811
        %v2824 = vmul.f32 %v2797, %v2811
        %v2825 = vmul.f32 %v2800, %v2811
        %v2826 = vmul.f32 %v2802, %v2811
        %v2827 = vmul.f32 %v2805, %v2811
        %v2828 = vmul.f32 %v2807, %v2811
        %v2829 = vld [vmem:[%s10] sm:$0x1]
        %v2831 = vperm.slane %v2829, 0
        %v2833 = vadd.f32 %v2813, %v2831
        %v2834 = vadd.f32 %v2814, %v2831
        %v2835 = vadd.f32 %v2815, %v2831
        %v2836 = vadd.f32 %v2816, %v2831
        %v2837 = vadd.f32 %v2817, %v2831
        %v2838 = vadd.f32 %v2818, %v2831
        %v2839 = vadd.f32 %v2819, %v2831
        %v2840 = vadd.f32 %v2820, %v2831
        %v2841 = vadd.f32 %v2821, %v2831
        %v2842 = vadd.f32 %v2822, %v2831
        %v2843 = vadd.f32 %v2823, %v2831
        %v2844 = vadd.f32 %v2824, %v2831
        %v2845 = vadd.f32 %v2825, %v2831
        %v2846 = vadd.f32 %v2826, %v2831
        %v2847 = vadd.f32 %v2827, %v2831
        %v2848 = vadd.f32 %v2828, %v2831
        %v2849 = vld [vmem:[%s11] sm:$0xf]
        %v2850 = vld [vmem:[%s11 + $0x4] sm:$0xf]
        %v2851 = vld [vmem:[%s11 + $0x8] sm:$0xf]
        %v2852 = vld [vmem:[%s11 + $0xc] sm:$0xf]
        %v2853 = vld [vmem:[%s11 + $0x10] sm:$0xf]
        %v2854 = vld [vmem:[%s11 + $0x14] sm:$0xf]
        %v2855 = vld [vmem:[%s11 + $0x18] sm:$0xf]
        %v2856 = vld [vmem:[%s11 + $0x1c] sm:$0xf]
        %v2865 = vunpack.c.l.b16 %v2849
        %v2866 = vunpack.c.l.b16 %v2850
        %v2867 = vunpack.c.l.b16 %v2851
        %v2868 = vunpack.c.l.b16 %v2852
        %v2869 = vunpack.c.l.b16 %v2853
        %v2870 = vunpack.c.l.b16 %v2854
        %v2871 = vunpack.c.l.b16 %v2855
        %v2872 = vunpack.c.l.b16 %v2856
        %v2873 = vpack.c.b16 %v2866, %v2865
        %v2874 = vpack.c.b16 %v2868, %v2867
        %v2875 = vpack.c.b16 %v2870, %v2869
        %v2876 = vpack.c.b16 %v2872, %v2871
        %2881 = vmatpush.bf16.msra.mxu0 0
        %2882 = vmatpush.bf16.msra.mxu0 0
        %2883 = vmatpush.bf16.msra.mxu0 0
        %2884 = vmatpush.bf16.msra.mxu0 0
        %2885 = vmatpush.bf16.msra.mxu0 %v2876
        %2886 = vmatpush.bf16.msra.mxu0 %v2875
        %2887 = vmatpush.bf16.msra.mxu0 %v2874
        %2888 = vmatpush.bf16.msra.mxu0 %v2873
        %2889 = vmatmul.bf16.gmra.mxu0 %v563
        %v2890 = vpop.f32.mrf.mxu0
        %v2891 = vadd.f32 0.0, %v2890
        %v2892 = vpop.f32.mrf.mxu0
        %v2893 = vadd.f32 0.0, %v2892
        %2894 = vmatmul.bf16.gmra.mxu0 %v566
        %v2895 = vpop.f32.mrf.mxu0
        %v2896 = vadd.f32 0.0, %v2895
        %v2897 = vpop.f32.mrf.mxu0
        %v2898 = vadd.f32 0.0, %v2897
        %2899 = vmatmul.bf16.gmra.mxu0 %v569
        %v2900 = vpop.f32.mrf.mxu0
        %v2901 = vadd.f32 0.0, %v2900
        %v2902 = vpop.f32.mrf.mxu0
        %v2903 = vadd.f32 0.0, %v2902
        %2904 = vmatmul.bf16.gmra.mxu0 %v572
        %v2905 = vpop.f32.mrf.mxu0
        %v2906 = vadd.f32 0.0, %v2905
        %v2907 = vpop.f32.mrf.mxu0
        %v2908 = vadd.f32 0.0, %v2907
        %2909 = vmatmul.bf16.gmra.mxu0 %v575
        %v2910 = vpop.f32.mrf.mxu0
        %v2911 = vadd.f32 0.0, %v2910
        %v2912 = vpop.f32.mrf.mxu0
        %v2913 = vadd.f32 0.0, %v2912
        %2914 = vmatmul.bf16.gmra.mxu0 %v578
        %v2915 = vpop.f32.mrf.mxu0
        %v2916 = vadd.f32 0.0, %v2915
        %v2917 = vpop.f32.mrf.mxu0
        %v2918 = vadd.f32 0.0, %v2917
        %2919 = vmatmul.bf16.gmra.mxu0 %v581
        %v2920 = vpop.f32.mrf.mxu0
        %v2921 = vadd.f32 0.0, %v2920
        %v2922 = vpop.f32.mrf.mxu0
        %v2923 = vadd.f32 0.0, %v2922
        %2924 = vmatmul.bf16.gmra.mxu0 %v584
        %v2925 = vpop.f32.mrf.mxu0
        %v2926 = vadd.f32 0.0, %v2925
        %v2927 = vpop.f32.mrf.mxu0
        %v2928 = vadd.f32 0.0, %v2927
        %2929 = vdwg.mxu0
        %v2930 = vld [vmem:[%s12] sm:$0x1]
        %v2932 = vperm.slane %v2930, 0
        %v2934 = vmul.f32 %v2891, %v2932
        %v2935 = vmul.f32 %v2893, %v2932
        %v2936 = vmul.f32 %v2896, %v2932
        %v2937 = vmul.f32 %v2898, %v2932
        %v2938 = vmul.f32 %v2901, %v2932
        %v2939 = vmul.f32 %v2903, %v2932
        %v2940 = vmul.f32 %v2906, %v2932
        %v2941 = vmul.f32 %v2908, %v2932
        %v2942 = vmul.f32 %v2911, %v2932
        %v2943 = vmul.f32 %v2913, %v2932
        %v2944 = vmul.f32 %v2916, %v2932
        %v2945 = vmul.f32 %v2918, %v2932
        %v2946 = vmul.f32 %v2921, %v2932
        %v2947 = vmul.f32 %v2923, %v2932
        %v2948 = vmul.f32 %v2926, %v2932
        %v2949 = vmul.f32 %v2928, %v2932
        %v2950 = vld [vmem:[%s13] sm:$0x1]
        %v2952 = vperm.slane %v2950, 0
        %v2954 = vadd.f32 %v2934, %v2952
        %v2955 = vadd.f32 %v2935, %v2952
        %v2956 = vadd.f32 %v2936, %v2952
        %v2957 = vadd.f32 %v2937, %v2952
        %v2958 = vadd.f32 %v2938, %v2952
        %v2959 = vadd.f32 %v2939, %v2952
        %v2960 = vadd.f32 %v2940, %v2952
        %v2961 = vadd.f32 %v2941, %v2952
        %v2962 = vadd.f32 %v2942, %v2952
        %v2963 = vadd.f32 %v2943, %v2952
        %v2964 = vadd.f32 %v2944, %v2952
        %v2965 = vadd.f32 %v2945, %v2952
        %v2966 = vadd.f32 %v2946, %v2952
        %v2967 = vadd.f32 %v2947, %v2952
        %v2968 = vadd.f32 %v2948, %v2952
        %v2969 = vadd.f32 %v2949, %v2952
        %v2970 = vadd.f32 %v2833, %v2954
        %v2971 = vadd.f32 %v2834, %v2955
        %v2972 = vadd.f32 %v2835, %v2956
        %v2973 = vadd.f32 %v2836, %v2957
        %v2974 = vadd.f32 %v2837, %v2958
        %v2975 = vadd.f32 %v2838, %v2959
        %v2976 = vadd.f32 %v2839, %v2960
        %v2977 = vadd.f32 %v2840, %v2961
        %v2978 = vadd.f32 %v2841, %v2962
        %v2979 = vadd.f32 %v2842, %v2963
        %v2980 = vadd.f32 %v2843, %v2964
        %v2981 = vadd.f32 %v2844, %v2965
        %v2982 = vadd.f32 %v2845, %v2966
        %v2983 = vadd.f32 %v2846, %v2967
        %v2984 = vadd.f32 %v2847, %v2968
        %v2985 = vadd.f32 %v2848, %v2969
        %v2986 = vmax.f32 %v2970, 0.0
        %v2987 = vmax.f32 %v2971, 0.0
        %v2988 = vmax.f32 %v2972, 0.0
        %v2989 = vmax.f32 %v2973, 0.0
        %v2990 = vmax.f32 %v2974, 0.0
        %v2991 = vmax.f32 %v2975, 0.0
        %v2992 = vmax.f32 %v2976, 0.0
        %v2993 = vmax.f32 %v2977, 0.0
        %v2994 = vmax.f32 %v2978, 0.0
        %v2995 = vmax.f32 %v2979, 0.0
        %v2996 = vmax.f32 %v2980, 0.0
        %v2997 = vmax.f32 %v2981, 0.0
        %v2998 = vmax.f32 %v2982, 0.0
        %v2999 = vmax.f32 %v2983, 0.0
        %v3000 = vmax.f32 %v2984, 0.0
        %v3001 = vmax.f32 %v2985, 0.0
        %3002 = vst [vmem:[%s463] sm:$0xff] %v2986
        %3003 = vst [vmem:[%s463 + $0x8] sm:$0xff] %v2987
        %3004 = vst [vmem:[%s463 + $0x10] sm:$0xff] %v2988
        %3005 = vst [vmem:[%s463 + $0x18] sm:$0xff] %v2989
        %3006 = vst [vmem:[%s463 + $0x20] sm:$0xff] %v2990
        %3007 = vst [vmem:[%s463 + $0x28] sm:$0xff] %v2991
        %3008 = vst [vmem:[%s463 + $0x30] sm:$0xff] %v2992
        %3009 = vst [vmem:[%s463 + $0x38] sm:$0xff] %v2993
        %3010 = vst [vmem:[%s463 + $0x40] sm:$0xff] %v2994
        %3011 = vst [vmem:[%s463 + $0x48] sm:$0xff] %v2995
        %3012 = vst [vmem:[%s463 + $0x50] sm:$0xff] %v2996
        %3013 = vst [vmem:[%s463 + $0x58] sm:$0xff] %v2997
        %3014 = vst [vmem:[%s463 + $0x60] sm:$0xff] %v2998
        %3015 = vst [vmem:[%s463 + $0x68] sm:$0xff] %v2999
        %3016 = vst [vmem:[%s463 + $0x70] sm:$0xff] %v3000
        %3017 = vst [vmem:[%s463 + $0x78] sm:$0xff] %v3001
        %s3018 = sand.u32 %s335, 1
        %s3019 = scalar_lea.sflag [#allocation3], %s3018
        %s3020 = sand.u32 %s335, 1
        %s3021 = smul.addr %s3020, 128
        %s3022 = scalar_lea.vmem [#allocation2], %s3021
        // Predicated region
        $region77: #{tpu_custom_call.1} parent=75 // pred_check
          %p3023 = pneg %p345
        $region78: #{tpu_custom_call.1} parent=75 // pred_check_branch
          %3025 = sbr.rel (%p3023) target = $region80
        $region79: #{tpu_custom_call.1} parent=75 // pred_region
          %s3026 = smul.u32 2, %s28
          %3028 = vsyncadd %s3019, 0
          %s3029 = smul.addr %s3026, 8
          %s3030 = smul.addr %s3029, 8
          %s3031 = scalar_lea.hbm %s14, %s3030
          %s3032 = sshll.u32 %s3022, 4
          %s3033 = int_to_ptr.vmem [resolvable:$true] %s3032
          %s3034 = sshll.u32 %s3031, 4
          %s3035 = int_to_ptr.hbm [resolvable:$true] %s3034
          %3040 = dma.vmem_to_hbm [thread:$0]  %s3033, 2048, %s3035, %s3019, 128, 128, 8
        $region80: #{tpu_custom_call.1} parent=75 // pred_fallthru
          _
      $region76: #{tpu_custom_call.1} parent=5 // pred_fallthru
        _
      %p3041 = scmp.le.s32.totalorder 2, %s23
      // Predicated region
      $region81: #{tpu_custom_call.1} parent=5 // pred_check
        %p3042 = pneg %p3041
      $region82: #{tpu_custom_call.1} parent=5 // pred_check_branch
        %3044 = sbr.rel (%p3042) target = $region84
      $region83: #{tpu_custom_call.1} parent=5 // pred_region
        %s3045 = ssub.s32 %s23, 2
        // Predicated region
        $region85: #{tpu_custom_call.1} parent=83 // pred_check
          %p3046 = pneg %p351
        $region86: #{tpu_custom_call.1} parent=83 // pred_check_branch
          %3048 = sbr.rel (%p3046) target = $region88
        $region87: #{tpu_custom_call.1} parent=83 // pred_region
          %s3049 = sand.u32 %s336, 1
          %s3050 = scalar_lea.sflag [#allocation3], %s3049
          %s3051 = sand.u32 %s336, 1
          %s3052 = smul.addr %s3051, 128
          %s3053 = scalar_lea.vmem [#allocation2], %s3052
          %3055 = dma.done %s3050, 2048
        $region88: #{tpu_custom_call.1} parent=83 // pred_fallthru
          _
      $region84: #{tpu_custom_call.1} parent=5 // pred_fallthru
        _
    $region6: #{tpu_custom_call.1} parent=1 // loop_footer
      %s27 = sadd.s32 1, %s23
    $region7: #{tpu_custom_call.1} parent=1 // loop_footer_branch
      %22 = sbr.rel target = $region3
    $region8: #{tpu_custom_call.1} parent=1 // loop_exit
      _
    %3056 = vsyncpa [#allocation3], 1
    %s3057 = scalar_lea.sflag [#allocation3], 1
    %3058 = vsyncpa %s3057, 1

</llo_original>
